<compile_context>
chip_gen: v6e
topology: v6e:2x2x1
jax: 0.10.0
libtpu: 0.0.40
codegen_flags: <defaults>
</compile_context>

<pallas_src>
import jax
import jax.numpy as jnp
from jax import lax
from jax.experimental import pallas as pl
from jax.experimental.pallas import tpu as pltpu  # noqa: F401  (TPU backend)

NDF = 8        # constant.ndf  (small, synthetic)
N_CLASS = 4    # constant.n_class
EPS = 1e-5     # nn.BatchNorm2d default eps
K = 4
STRIDE = 2
PAD = 1


# ----------------------------- Pallas kernels ------------------------------
def _conv_lrelu_kernel(w_ref, p_ref, o_ref):
    # (C_out, K) @ (K, M) -> (C_out, M), LeakyReLU(0.2)
    y = jnp.dot(w_ref[...], p_ref[...], preferred_element_type=jnp.float32)
    o_ref[...] = jnp.where(y > 0, y, 0.2 * y).astype(o_ref.dtype)


def _conv_bn_lrelu_kernel(w_ref, p_ref, g_ref, b_ref, o_ref):
    # conv (as transposed matmul) + BatchNorm2d (training-mode batch stats over
    # M = B*Ho*Wo, biased variance, single pass) + LeakyReLU(0.2)
    y = jnp.dot(w_ref[...], p_ref[...], preferred_element_type=jnp.float32)
    mean = jnp.mean(y, axis=1, keepdims=True)
    var = jnp.mean(y * y, axis=1, keepdims=True) - mean * mean
    z = (y - mean) * lax.rsqrt(var + EPS) * g_ref[...] + b_ref[...]
    o_ref[...] = jnp.where(z > 0, z, 0.2 * z).astype(o_ref.dtype)


def _conv_bn_lrelu_out_kernel(w_ref, p_ref, g_ref, b_ref,
                              w5e_ref, sel_ref, w5lab_ref, labT_ref, o_ref):
    # layer 4 (conv+BN+LeakyReLU) fused with: label-concat + Conv(.., 1, 4, 1, 0)
    # + Sigmoid.  The final 4x4/stride-1 conv is a full dot product per batch
    # element, done as an elementwise mul + reductions (no N=1 MXU matmul).
    y = jnp.dot(w_ref[...], p_ref[...], preferred_element_type=jnp.float32)
    mean = jnp.mean(y, axis=1, keepdims=True)
    var = jnp.mean(y * y, axis=1, keepdims=True) - mean * mean
    z = (y - mean) * lax.rsqrt(var + EPS) * g_ref[...] + b_ref[...]
    a = jnp.where(z > 0, z, 0.2 * z)                       # (C4, B*16)  f32
    # image contribution of the final conv: per-batch segment sum via a small
    # selection matmul (C4, B*16) @ (B*16, B)
    img = jnp.dot(a * w5e_ref[...], sel_ref[...],
                  preferred_element_type=jnp.float32)       # (C4, B)
    img = jnp.sum(img, axis=0, keepdims=True)               # (1, B)
    # label channels are spatially constant -> weight pre-summed over 4x4
    lab = jnp.sum(w5lab_ref[...] * labT_ref[...], axis=0, keepdims=True)  # (1, B)
    o_ref[...] = jax.nn.sigmoid(img + lab)


def _full_spec(shape):
    return pl.BlockSpec(shape, lambda: (0,) * len(shape))


def conv_lrelu(wf, p):
    c_out, m = wf.shape[0], p.shape[1]
    return pl.pallas_call(
        _conv_lrelu_kernel,
        out_shape=jax.ShapeDtypeStruct((c_out, m), jnp.bfloat16),
        in_specs=[_full_spec(wf.shape), _full_spec(p.shape)],
        out_specs=_full_spec((c_out, m)),
    )(wf, p)


def conv_bn_lrelu(wf, p, g, b):
    c_out, m = wf.shape[0], p.shape[1]
    return pl.pallas_call(
        _conv_bn_lrelu_kernel,
        out_shape=jax.ShapeDtypeStruct((c_out, m), jnp.bfloat16),
        in_specs=[_full_spec(wf.shape), _full_spec(p.shape),
                  _full_spec(g.shape), _full_spec(b.shape)],
        out_specs=_full_spec((c_out, m)),
    )(wf, p, g, b)


def conv_bn_lrelu_out(wf, p, g, b, w5e, sel, w5lab, labT):
    batch = labT.shape[1]
    return pl.pallas_call(
        _conv_bn_lrelu_out_kernel,
        out_shape=jax.ShapeDtypeStruct((1, batch), jnp.float32),
        in_specs=[_full_spec(wf.shape), _full_spec(p.shape),
                  _full_spec(g.shape), _full_spec(b.shape),
                  _full_spec(w5e.shape), _full_spec(sel.shape),
                  _full_spec(w5lab.shape), _full_spec(labT.shape)],
        out_specs=_full_spec((1, batch)),
    )(wf, p, g, b, w5e, sel, w5lab, labT)


# ------------------------------- JAX glue ----------------------------------
def im2col_cm(x, k=K, stride=STRIDE, pad=PAD):
    """Channel-major im2col.

    x: (C, B, H, W)  ->  P: (C*k*k, B*Ho*Wo) with row order (ci, kh, kw)
    (matches PyTorch Conv2d weight .reshape(C_out, -1)) and column order
    (b, oy, ox).  Only slicing + stack + reshape; no NCHW<->NHWC transpose.
    """
    C, B, H, W = x.shape
    Ho = (H + 2 * pad - k) // stride + 1
    Wo = (W + 2 * pad - k) // stride + 1
    xp = jnp.pad(x, ((0, 0), (0, 0), (pad, pad), (pad, pad)))
    cols = [
        xp[:, :, kh: kh + stride * (Ho - 1) + 1: stride,
               kw: kw + stride * (Wo - 1) + 1: stride]
        for kh in range(k) for kw in range(k)
    ]
    p = jnp.stack(cols, axis=1)                    # (C, k*k, B, Ho, Wo)
    return p.reshape(C * k * k, B * Ho * Wo), Ho, Wo


def dcgan_d_forward(images, label, params):
    B = images.shape[0]
    # NCHW (B,1,H,W) -> channel-major (1,B,H,W), bf16 activations
    x = images.astype(jnp.bfloat16).transpose(1, 0, 2, 3)

    # layer 1: Conv(1, ndf, 4, 2, 1) + LeakyReLU(0.2)
    p, Ho, Wo = im2col_cm(x)
    y = conv_lrelu(params["w1"], p)                     # (ndf, B*32*32)
    x = y.reshape(NDF, B, Ho, Wo)

    # layers 2..3: Conv + BatchNorm2d + LeakyReLU(0.2)
    for idx, c_out in (("2", NDF * 2), ("3", NDF * 4)):
        p, Ho, Wo = im2col_cm(x)
        y = conv_bn_lrelu(params["w" + idx], p, params["g" + idx], params["b" + idx])
        x = y.reshape(c_out, B, Ho, Wo)

    # layer 4 + label concat + Conv(ndf*8+n_class, 1, 4, 1, 0) + Sigmoid (fused)
    p, Ho4, Wo4 = im2col_cm(x)                          # (ndf*4*16, B*16)
    s4 = Ho4 * Wo4                                      # 16
    w5e = jnp.tile(params["w5_img"], (1, B))            # (ndf*8, B*16)
    sel = jnp.repeat(jnp.eye(B, dtype=jnp.float32), s4, axis=0)   # (B*16, B)
    labT = label.astype(jnp.float32).T                  # (n_class, B)
    out = conv_bn_lrelu_out(params["w4"], p, params["g4"], params["b4"],
                            w5e, sel, params["w5_lab"], labT)     # (1, B)
    return out.reshape(-1)                              # == view(-1,1).squeeze(1)


def init_params(key):
    ks = jax.random.split(key, 5)
    std = 0.02  # DCGAN-style deterministic init
    w1 = std * jax.random.normal(ks[0], (NDF, 1, K, K), jnp.float32)
    w2 = std * jax.random.normal(ks[1], (NDF * 2, NDF, K, K), jnp.float32)
    w3 = std * jax.random.normal(ks[2], (NDF * 4, NDF * 2, K, K), jnp.float32)
    w4 = std * jax.random.normal(ks[3], (NDF * 8, NDF * 4, K, K), jnp.float32)
    w5 = std * jax.random.normal(ks[4], (1, NDF * 8 + N_CLASS, K, K), jnp.float32)
    return {
        # conv weights flattened to (C_out, C_in*k*k), bf16 for the MXU
        "w1": w1.reshape(NDF, -1).astype(jnp.bfloat16),
        "w2": w2.reshape(NDF * 2, -1).astype(jnp.bfloat16),
        "w3": w3.reshape(NDF * 4, -1).astype(jnp.bfloat16),
        "w4": w4.reshape(NDF * 8, -1).astype(jnp.bfloat16),
        # final conv split into image part (per 4x4 position) and label part
        # (pre-summed over the 4x4 spatial extent, since labels are constant)
        "w5_img": w5[0, :NDF * 8].reshape(NDF * 8, K * K).astype(jnp.float32),
        "w5_lab": w5[0, NDF * 8:].sum(axis=(1, 2)).reshape(N_CLASS, 1),
        # BatchNorm affine params, (C, 1) so they broadcast along lanes
        "g2": jnp.ones((NDF * 2, 1), jnp.float32), "b2": jnp.zeros((NDF * 2, 1), jnp.float32),
        "g3": jnp.ones((NDF * 4, 1), jnp.float32), "b3": jnp.zeros((NDF * 4, 1), jnp.float32),
        "g4": jnp.ones((NDF * 8, 1), jnp.float32), "b4": jnp.zeros((NDF * 8, 1), jnp.float32),
    }


if __name__ == "__main__":
    key = jax.random.PRNGKey(0)
    k_img, k_param = jax.random.split(key)
    B = 2
    images = jax.random.normal(k_img, (B, 1, 64, 64), jnp.float32)   # NCHW, 1 channel
    label = jax.nn.one_hot(jnp.array([1, 3]), N_CLASS).astype(jnp.float32)  # (B, n_class)
    params = init_params(k_param)

    fwd = jax.jit(dcgan_d_forward)
    out = fwd(images, label, params)
    out = jax.block_until_ready(out)

    assert out.shape == (B,), out.shape
    assert bool(jnp.all(jnp.isfinite(out)))
    assert bool(jnp.all((out > 0.0) & (out < 1.0)))  # sigmoid range
    print("KERNEL_OK")
</pallas_src>

<mosaic_0001>
module attributes {stable_mosaic.version = 11 : i64} {
  func.func @_conv_lrelu_kernel(%arg0: memref<8x16xbf16, #tpu.memory_space<vmem>>, %arg1: memref<16x2048xbf16, #tpu.memory_space<vmem>>, %arg2: memref<8x2048xbf16, #tpu.memory_space<vmem>>) attributes {dimension_semantics = [], scalar_prefetch = 0 : i64, scratch_operands = 0 : i64, tpu.core_type = #tpu.core_type<tc>} {
    %c0 = arith.constant 0 : index
    %c0_0 = arith.constant 0 : index
    %0 = vector.load %arg0[%c0, %c0_0] : memref<8x16xbf16, #tpu.memory_space<vmem>>, vector<8x16xbf16>
    %c0_1 = arith.constant 0 : index
    %c0_2 = arith.constant 0 : index
    %1 = vector.load %arg1[%c0_1, %c0_2] : memref<16x2048xbf16, #tpu.memory_space<vmem>>, vector<16x2048xbf16>
    %cst = arith.constant dense<0.000000e+00> : vector<8x2048xf32>
    %2 = tpu.matmul %0, %1, %cst {dimension_numbers = #tpu.dot_dimension_numbers<[1], [0], [0], [1], [0, 0, 1, 1], [], []>} : vector<8x16xbf16>, vector<16x2048xbf16>, vector<8x2048xf32> -> vector<8x2048xf32>
    %cst_3 = arith.constant 0.000000e+00 : f32
    %3 = vector.broadcast %cst_3 : f32 to vector<8x2048xf32>
    %4 = arith.cmpf ogt, %2, %3 : vector<8x2048xf32>
    %cst_4 = arith.constant 2.000000e-01 : f32
    %5 = vector.broadcast %cst_4 : f32 to vector<8x2048xf32>
    %6 = arith.mulf %5, %2 : vector<8x2048xf32>
    %7 = arith.select %4, %2, %6 : vector<8x2048xi1>, vector<8x2048xf32>
    %8 = arith.truncf %7 : vector<8x2048xf32> to vector<8x2048xbf16>
    %c0_5 = arith.constant 0 : index
    %c0_6 = arith.constant 0 : index
    %9 = vector.load %arg2[%c0_5, %c0_6] : memref<8x2048xbf16, #tpu.memory_space<vmem>>, vector<8x2048xbf16>
    tpu.vector_store %arg2[%c0_5, %c0_6], %8 {strides = array<i32>} : memref<8x2048xbf16, #tpu.memory_space<vmem>>, vector<8x2048xbf16>,
    return
  }
}

module attributes {stable_mosaic.version = 11 : i64} {
  func.func @_conv_bn_lrelu_kernel(%arg0: memref<16x128xbf16, #tpu.memory_space<vmem>>, %arg1: memref<128x512xbf16, #tpu.memory_space<vmem>>, %arg2: memref<16x1xf32, #tpu.memory_space<vmem>>, %arg3: memref<16x1xf32, #tpu.memory_space<vmem>>, %arg4: memref<16x512xbf16, #tpu.memory_space<vmem>>) attributes {dimension_semantics = [], scalar_prefetch = 0 : i64, scratch_operands = 0 : i64, tpu.core_type = #tpu.core_type<tc>} {
    %c0 = arith.constant 0 : index
    %c0_0 = arith.constant 0 : index
    %0 = vector.load %arg0[%c0, %c0_0] : memref<16x128xbf16, #tpu.memory_space<vmem>>, vector<16x128xbf16>
    %c0_1 = arith.constant 0 : index
    %c0_2 = arith.constant 0 : index
    %1 = vector.load %arg1[%c0_1, %c0_2] : memref<128x512xbf16, #tpu.memory_space<vmem>>, vector<128x512xbf16>
    %cst = arith.constant dense<0.000000e+00> : vector<16x512xf32>
    %2 = tpu.matmul %0, %1, %cst {dimension_numbers = #tpu.dot_dimension_numbers<[1], [0], [0], [1], [0, 0, 1, 1], [], []>} : vector<16x128xbf16>, vector<128x512xbf16>, vector<16x512xf32> -> vector<16x512xf32>
    %cst_3 = arith.constant dense<0.000000e+00> : vector<16xf32>
    %3 = vector.multi_reduction <add>, %2, %cst_3 [1] : vector<16x512xf32> to vector<16xf32>
    %4 = vector.shape_cast %3 : vector<16xf32> to vector<16x1xf32>
    %cst_4 = arith.constant 5.120000e+02 : f32
    %5 = vector.broadcast %cst_4 : f32 to vector<16x1xf32>
    %6 = arith.divf %4, %5 : vector<16x1xf32>
    %7 = arith.mulf %2, %2 : vector<16x512xf32>
    %cst_5 = arith.constant dense<0.000000e+00> : vector<16xf32>
    %8 = vector.multi_reduction <add>, %7, %cst_5 [1] : vector<16x512xf32> to vector<16xf32>
    %9 = vector.shape_cast %8 : vector<16xf32> to vector<16x1xf32>
    %cst_6 = arith.constant 5.120000e+02 : f32
    %10 = vector.broadcast %cst_6 : f32 to vector<16x1xf32>
    %11 = arith.divf %9, %10 : vector<16x1xf32>
    %12 = arith.mulf %6, %6 : vector<16x1xf32>
    %13 = arith.subf %11, %12 : vector<16x1xf32>
    %14 = vector.broadcast %6 : vector<16x1xf32> to vector<16x512xf32>
    %15 = arith.subf %2, %14 : vector<16x512xf32>
    %cst_7 = arith.constant 9.99999974E-6 : f32
    %16 = vector.broadcast %cst_7 : f32 to vector<16x1xf32>
    %17 = arith.addf %13, %16 : vector<16x1xf32>
    %18 = math.rsqrt %17 : vector<16x1xf32>
    %19 = vector.broadcast %18 : vector<16x1xf32> to vector<16x512xf32>
    %20 = arith.mulf %15, %19 : vector<16x512xf32>
    %c0_8 = arith.constant 0 : index
    %c0_9 = arith.constant 0 : index
    %21 = vector.load %arg2[%c0_8, %c0_9] : memref<16x1xf32, #tpu.memory_space<vmem>>, vector<16x1xf32>
    %22 = vector.broadcast %21 : vector<16x1xf32> to vector<16x512xf32>
    %23 = arith.mulf %20, %22 : vector<16x512xf32>
    %c0_10 = arith.constant 0 : index
    %c0_11 = arith.constant 0 : index
    %24 = vector.load %arg3[%c0_10, %c0_11] : memref<16x1xf32, #tpu.memory_space<vmem>>, vector<16x1xf32>
    %25 = vector.broadcast %24 : vector<16x1xf32> to vector<16x512xf32>
    %26 = arith.addf %23, %25 : vector<16x512xf32>
    %cst_12 = arith.constant 0.000000e+00 : f32
    %27 = vector.broadcast %cst_12 : f32 to vector<16x512xf32>
    %28 = arith.cmpf ogt, %26, %27 : vector<16x512xf32>
    %cst_13 = arith.constant 2.000000e-01 : f32
    %29 = vector.broadcast %cst_13 : f32 to vector<16x512xf32>
    %30 = arith.mulf %29, %26 : vector<16x512xf32>
    %31 = arith.select %28, %26, %30 : vector<16x512xi1>, vector<16x512xf32>
    %32 = arith.truncf %31 : vector<16x512xf32> to vector<16x512xbf16>
    %c0_14 = arith.constant 0 : index
    %c0_15 = arith.constant 0 : index
    %33 = vector.load %arg4[%c0_14, %c0_15] : memref<16x512xbf16, #tpu.memory_space<vmem>>, vector<16x512xbf16>
    tpu.vector_store %arg4[%c0_14, %c0_15], %32 {strides = array<i32>} : memref<16x512xbf16, #tpu.memory_space<vmem>>, vector<16x512xbf16>,
    return
  }
}

module attributes {stable_mosaic.version = 11 : i64} {
  func.func @_conv_bn_lrelu_kernel(%arg0: memref<32x256xbf16, #tpu.memory_space<vmem>>, %arg1: memref<256x128xbf16, #tpu.memory_space<vmem>>, %arg2: memref<32x1xf32, #tpu.memory_space<vmem>>, %arg3: memref<32x1xf32, #tpu.memory_space<vmem>>, %arg4: memref<32x128xbf16, #tpu.memory_space<vmem>>) attributes {dimension_semantics = [], scalar_prefetch = 0 : i64, scratch_operands = 0 : i64, tpu.core_type = #tpu.core_type<tc>} {
    %c0 = arith.constant 0 : index
    %c0_0 = arith.constant 0 : index
    %0 = vector.load %arg0[%c0, %c0_0] : memref<32x256xbf16, #tpu.memory_space<vmem>>, vector<32x256xbf16>
    %c0_1 = arith.constant 0 : index
    %c0_2 = arith.constant 0 : index
    %1 = vector.load %arg1[%c0_1, %c0_2] : memref<256x128xbf16, #tpu.memory_space<vmem>>, vector<256x128xbf16>
    %cst = arith.constant dense<0.000000e+00> : vector<32x128xf32>
    %2 = tpu.matmul %0, %1, %cst {dimension_numbers = #tpu.dot_dimension_numbers<[1], [0], [0], [1], [0, 0, 1, 1], [], []>} : vector<32x256xbf16>, vector<256x128xbf16>, vector<32x128xf32> -> vector<32x128xf32>
    %cst_3 = arith.constant dense<0.000000e+00> : vector<32xf32>
    %3 = vector.multi_reduction <add>, %2, %cst_3 [1] : vector<32x128xf32> to vector<32xf32>
    %4 = vector.shape_cast %3 : vector<32xf32> to vector<32x1xf32>
    %cst_4 = arith.constant 1.280000e+02 : f32
    %5 = vector.broadcast %cst_4 : f32 to vector<32x1xf32>
    %6 = arith.divf %4, %5 : vector<32x1xf32>
    %7 = arith.mulf %2, %2 : vector<32x128xf32>
    %cst_5 = arith.constant dense<0.000000e+00> : vector<32xf32>
    %8 = vector.multi_reduction <add>, %7, %cst_5 [1] : vector<32x128xf32> to vector<32xf32>
    %9 = vector.shape_cast %8 : vector<32xf32> to vector<32x1xf32>
    %cst_6 = arith.constant 1.280000e+02 : f32
    %10 = vector.broadcast %cst_6 : f32 to vector<32x1xf32>
    %11 = arith.divf %9, %10 : vector<32x1xf32>
    %12 = arith.mulf %6, %6 : vector<32x1xf32>
    %13 = arith.subf %11, %12 : vector<32x1xf32>
    %14 = vector.broadcast %6 : vector<32x1xf32> to vector<32x128xf32>
    %15 = arith.subf %2, %14 : vector<32x128xf32>
    %cst_7 = arith.constant 9.99999974E-6 : f32
    %16 = vector.broadcast %cst_7 : f32 to vector<32x1xf32>
    %17 = arith.addf %13, %16 : vector<32x1xf32>
    %18 = math.rsqrt %17 : vector<32x1xf32>
    %19 = vector.broadcast %18 : vector<32x1xf32> to vector<32x128xf32>
    %20 = arith.mulf %15, %19 : vector<32x128xf32>
    %c0_8 = arith.constant 0 : index
    %c0_9 = arith.constant 0 : index
    %21 = vector.load %arg2[%c0_8, %c0_9] : memref<32x1xf32, #tpu.memory_space<vmem>>, vector<32x1xf32>
    %22 = vector.broadcast %21 : vector<32x1xf32> to vector<32x128xf32>
    %23 = arith.mulf %20, %22 : vector<32x128xf32>
    %c0_10 = arith.constant 0 : index
    %c0_11 = arith.constant 0 : index
    %24 = vector.load %arg3[%c0_10, %c0_11] : memref<32x1xf32, #tpu.memory_space<vmem>>, vector<32x1xf32>
    %25 = vector.broadcast %24 : vector<32x1xf32> to vector<32x128xf32>
    %26 = arith.addf %23, %25 : vector<32x128xf32>
    %cst_12 = arith.constant 0.000000e+00 : f32
    %27 = vector.broadcast %cst_12 : f32 to vector<32x128xf32>
    %28 = arith.cmpf ogt, %26, %27 : vector<32x128xf32>
    %cst_13 = arith.constant 2.000000e-01 : f32
    %29 = vector.broadcast %cst_13 : f32 to vector<32x128xf32>
    %30 = arith.mulf %29, %26 : vector<32x128xf32>
    %31 = arith.select %28, %26, %30 : vector<32x128xi1>, vector<32x128xf32>
    %32 = arith.truncf %31 : vector<32x128xf32> to vector<32x128xbf16>
    %c0_14 = arith.constant 0 : index
    %c0_15 = arith.constant 0 : index
    %33 = vector.load %arg4[%c0_14, %c0_15] : memref<32x128xbf16, #tpu.memory_space<vmem>>, vector<32x128xbf16>
    tpu.vector_store %arg4[%c0_14, %c0_15], %32 {strides = array<i32>} : memref<32x128xbf16, #tpu.memory_space<vmem>>, vector<32x128xbf16>,
    return
  }
}

module attributes {stable_mosaic.version = 11 : i64} {
  func.func @_conv_bn_lrelu_out_kernel(%arg0: memref<64x512xbf16, #tpu.memory_space<vmem>>, %arg1: memref<512x32xbf16, #tpu.memory_space<vmem>>, %arg2: memref<64x1xf32, #tpu.memory_space<vmem>>, %arg3: memref<64x1xf32, #tpu.memory_space<vmem>>, %arg4: memref<64x32xf32, #tpu.memory_space<vmem>>, %arg5: memref<32x2xf32, #tpu.memory_space<vmem>>, %arg6: memref<4x1xf32, #tpu.memory_space<vmem>>, %arg7: memref<4x2xf32, #tpu.memory_space<vmem>>, %arg8: memref<1x2xf32, #tpu.memory_space<vmem>>) attributes {dimension_semantics = [], scalar_prefetch = 0 : i64, scratch_operands = 0 : i64, tpu.core_type = #tpu.core_type<tc>} {
    %c0 = arith.constant 0 : index
    %c0_0 = arith.constant 0 : index
    %0 = vector.load %arg0[%c0, %c0_0] : memref<64x512xbf16, #tpu.memory_space<vmem>>, vector<64x512xbf16>
    %c0_1 = arith.constant 0 : index
    %c0_2 = arith.constant 0 : index
    %1 = vector.load %arg1[%c0_1, %c0_2] : memref<512x32xbf16, #tpu.memory_space<vmem>>, vector<512x32xbf16>
    %cst = arith.constant dense<0.000000e+00> : vector<64x32xf32>
    %2 = tpu.matmul %0, %1, %cst {dimension_numbers = #tpu.dot_dimension_numbers<[1], [0], [0], [1], [0, 0, 1, 1], [], []>} : vector<64x512xbf16>, vector<512x32xbf16>, vector<64x32xf32> -> vector<64x32xf32>
    %cst_3 = arith.constant dense<0.000000e+00> : vector<64xf32>
    %3 = vector.multi_reduction <add>, %2, %cst_3 [1] : vector<64x32xf32> to vector<64xf32>
    %4 = vector.shape_cast %3 : vector<64xf32> to vector<64x1xf32>
    %cst_4 = arith.constant 3.200000e+01 : f32
    %5 = vector.broadcast %cst_4 : f32 to vector<64x1xf32>
    %6 = arith.divf %4, %5 : vector<64x1xf32>
    %7 = arith.mulf %2, %2 : vector<64x32xf32>
    %cst_5 = arith.constant dense<0.000000e+00> : vector<64xf32>
    %8 = vector.multi_reduction <add>, %7, %cst_5 [1] : vector<64x32xf32> to vector<64xf32>
    %9 = vector.shape_cast %8 : vector<64xf32> to vector<64x1xf32>
    %cst_6 = arith.constant 3.200000e+01 : f32
    %10 = vector.broadcast %cst_6 : f32 to vector<64x1xf32>
    %11 = arith.divf %9, %10 : vector<64x1xf32>
    %12 = arith.mulf %6, %6 : vector<64x1xf32>
    %13 = arith.subf %11, %12 : vector<64x1xf32>
    %14 = vector.broadcast %6 : vector<64x1xf32> to vector<64x32xf32>
    %15 = arith.subf %2, %14 : vector<64x32xf32>
    %cst_7 = arith.constant 9.99999974E-6 : f32
    %16 = vector.broadcast %cst_7 : f32 to vector<64x1xf32>
    %17 = arith.addf %13, %16 : vector<64x1xf32>
    %18 = math.rsqrt %17 : vector<64x1xf32>
    %19 = vector.broadcast %18 : vector<64x1xf32> to vector<64x32xf32>
    %20 = arith.mulf %15, %19 : vector<64x32xf32>
    %c0_8 = arith.constant 0 : index
    %c0_9 = arith.constant 0 : index
    %21 = vector.load %arg2[%c0_8, %c0_9] : memref<64x1xf32, #tpu.memory_space<vmem>>, vector<64x1xf32>
    %22 = vector.broadcast %21 : vector<64x1xf32> to vector<64x32xf32>
    %23 = arith.mulf %20, %22 : vector<64x32xf32>
    %c0_10 = arith.constant 0 : index
    %c0_11 = arith.constant 0 : index
    %24 = vector.load %arg3[%c0_10, %c0_11] : memref<64x1xf32, #tpu.memory_space<vmem>>, vector<64x1xf32>
    %25 = vector.broadcast %24 : vector<64x1xf32> to vector<64x32xf32>
    %26 = arith.addf %23, %25 : vector<64x32xf32>
    %cst_12 = arith.constant 0.000000e+00 : f32
    %27 = vector.broadcast %cst_12 : f32 to vector<64x32xf32>
    %28 = arith.cmpf ogt, %26, %27 : vector<64x32xf32>
    %cst_13 = arith.constant 2.000000e-01 : f32
    %29 = vector.broadcast %cst_13 : f32 to vector<64x32xf32>
    %30 = arith.mulf %29, %26 : vector<64x32xf32>
    %31 = arith.select %28, %26, %30 : vector<64x32xi1>, vector<64x32xf32>
    %c0_14 = arith.constant 0 : index
    %c0_15 = arith.constant 0 : index
    %32 = vector.load %arg4[%c0_14, %c0_15] : memref<64x32xf32, #tpu.memory_space<vmem>>, vector<64x32xf32>
    %33 = arith.mulf %31, %32 : vector<64x32xf32>
    %c0_16 = arith.constant 0 : index
    %c0_17 = arith.constant 0 : index
    %34 = vector.load %arg5[%c0_16, %c0_17] : memref<32x2xf32, #tpu.memory_space<vmem>>, vector<32x2xf32>
    %cst_18 = arith.constant dense<0.000000e+00> : vector<64x2xf32>
    %35 = tpu.matmul %33, %34, %cst_18 {dimension_numbers = #tpu.dot_dimension_numbers<[1], [0], [0], [1], [0, 0, 1, 1], [], []>} : vector<64x32xf32>, vector<32x2xf32>, vector<64x2xf32> -> vector<64x2xf32>
    %cst_19 = arith.constant dense<0.000000e+00> : vector<2xf32>
    %36 = vector.multi_reduction <add>, %35, %cst_19 [0] : vector<64x2xf32> to vector<2xf32>
    %37 = vector.shape_cast %36 : vector<2xf32> to vector<1x2xf32>
    %c0_20 = arith.constant 0 : index
    %c0_21 = arith.constant 0 : index
    %38 = vector.load %arg6[%c0_20, %c0_21] : memref<4x1xf32, #tpu.memory_space<vmem>>, vector<4x1xf32>
    %c0_22 = arith.constant 0 : index
    %c0_23 = arith.constant 0 : index
    %39 = vector.load %arg7[%c0_22, %c0_23] : memref<4x2xf32, #tpu.memory_space<vmem>>, vector<4x2xf32>
    %40 = vector.broadcast %38 : vector<4x1xf32> to vector<4x2xf32>
    %41 = arith.mulf %40, %39 : vector<4x2xf32>
    %cst_24 = arith.constant dense<0.000000e+00> : vector<2xf32>
    %42 = vector.multi_reduction <add>, %41, %cst_24 [0] : vector<4x2xf32> to vector<2xf32>
    %43 = vector.shape_cast %42 : vector<2xf32> to vector<1x2xf32>
    %44 = arith.addf %37, %43 : vector<1x2xf32>
    %45 = arith.negf %44 : vector<1x2xf32>
    %46 = math.exp %45 : vector<1x2xf32>
    %cst_25 = arith.constant 1.000000e+00 : f32
    %47 = vector.broadcast %cst_25 : f32 to vector<1x2xf32>
    %48 = arith.addf %47, %46 : vector<1x2xf32>
    %49 = arith.divf %47, %48 : vector<1x2xf32>
    %c0_26 = arith.constant 0 : index
    %c0_27 = arith.constant 0 : index
    %50 = vector.load %arg8[%c0_26, %c0_27] : memref<1x2xf32, #tpu.memory_space<vmem>>, vector<1x2xf32>
    tpu.vector_store %arg8[%c0_26, %c0_27], %49 {strides = array<i32>} : memref<1x2xf32, #tpu.memory_space<vmem>>, vector<1x2xf32>,
    return
  }
}

</mosaic_0001>

<llo_original>
// kernel: dcgan_d_forward.4
$region0: #{dcgan_d_forward.4}
  #allocation0 [shape = 'u32[]', space=smem, size = 0x4, offset = 0x4, fixed_abs, tag = 'smem constant byte address 0x4 - core index']
  #allocation1 [shape = 'u32[144,128]{1,0:T(1,128)}', space=vmem, size = 0x12000, scoped, tag = 'internal scratch']
  %s0 = inlined_call_operand.vmem [shape: bf16[8,16], index: 0, kind: input, shape index: {}]
  %s1 = inlined_call_operand.vmem [shape: bf16[16,2048], index: 1, kind: input, shape index: {}]
  %s2 = inlined_call_operand.vmem [shape: bf16[8,2048], index: 2, kind: output, shape index: {}]
  %s3 = sld [smem:[#allocation0]]
  $region18: #{dcgan_d_forward.4} parent=0
    _
  %s5 = ssub.s32 1, %s3
  %s6 = scalar_select 0, %s5, %s3
  // Predicated region
  $region2: #{dcgan_d_forward.4} parent=0 // pred_check
    _
  $region3: #{dcgan_d_forward.4} parent=0 // pred_check_branch
    %8 = sbr.rel (0) target = $region5
  $region4: #{dcgan_d_forward.4} parent=0 // pred_region
    _
  $region5: #{dcgan_d_forward.4} parent=0 // pred_fallthru
    _
  // Predicated region
  $region6: #{dcgan_d_forward.4} parent=0 // pred_check
    _
  $region7: #{dcgan_d_forward.4} parent=0 // pred_check_branch
    %10 = sbr.rel (0) target = $region9
  $region8: #{dcgan_d_forward.4} parent=0 // pred_region
    _
  $region9: #{dcgan_d_forward.4} parent=0 // pred_fallthru
    _
  %v12 = vld [vmem:[%s0] sm:$0xf]
  %v13 = vld [vmem:[%s1] sm:$0xff]
  %v14 = vld [vmem:[%s1 + $0x8] sm:$0xff]
  %v15 = vld [vmem:[%s1 + $0x10] sm:$0xff]
  %v16 = vld [vmem:[%s1 + $0x18] sm:$0xff]
  %v17 = vld [vmem:[%s1 + $0x20] sm:$0xff]
  %v18 = vld [vmem:[%s1 + $0x28] sm:$0xff]
  %v19 = vld [vmem:[%s1 + $0x30] sm:$0xff]
  %v20 = vld [vmem:[%s1 + $0x38] sm:$0xff]
  %v21 = vld [vmem:[%s1 + $0x40] sm:$0xff]
  %v22 = vld [vmem:[%s1 + $0x48] sm:$0xff]
  %v23 = vld [vmem:[%s1 + $0x50] sm:$0xff]
  %v24 = vld [vmem:[%s1 + $0x58] sm:$0xff]
  %v25 = vld [vmem:[%s1 + $0x60] sm:$0xff]
  %v26 = vld [vmem:[%s1 + $0x68] sm:$0xff]
  %v27 = vld [vmem:[%s1 + $0x70] sm:$0xff]
  %v28 = vld [vmem:[%s1 + $0x78] sm:$0xff]
  %v45 = vunpack.c.l.b16 %v13
  %v46 = vunpack.c.h.b16 %v13
  %v47 = vunpack.c.l.b16 %v14
  %v48 = vunpack.c.h.b16 %v14
  %v49 = vunpack.c.l.b16 %v15
  %v50 = vunpack.c.h.b16 %v15
  %v51 = vunpack.c.l.b16 %v16
  %v52 = vunpack.c.h.b16 %v16
  %v53 = vunpack.c.l.b16 %v17
  %v54 = vunpack.c.h.b16 %v17
  %v55 = vunpack.c.l.b16 %v18
  %v56 = vunpack.c.h.b16 %v18
  %v57 = vunpack.c.l.b16 %v19
  %v58 = vunpack.c.h.b16 %v19
  %v59 = vunpack.c.l.b16 %v20
  %v60 = vunpack.c.h.b16 %v20
  %v61 = vunpack.c.l.b16 %v21
  %v62 = vunpack.c.h.b16 %v21
  %v63 = vunpack.c.l.b16 %v22
  %v64 = vunpack.c.h.b16 %v22
  %v65 = vunpack.c.l.b16 %v23
  %v66 = vunpack.c.h.b16 %v23
  %v67 = vunpack.c.l.b16 %v24
  %v68 = vunpack.c.h.b16 %v24
  %v69 = vunpack.c.l.b16 %v25
  %v70 = vunpack.c.h.b16 %v25
  %v71 = vunpack.c.l.b16 %v26
  %v72 = vunpack.c.h.b16 %v26
  %v73 = vunpack.c.l.b16 %v27
  %v74 = vunpack.c.h.b16 %v27
  %v75 = vunpack.c.l.b16 %v28
  %v76 = vunpack.c.h.b16 %v28
  %v77 = vpack.c.b16 %v61, %v45
  %v78 = vpack.c.b16 %v62, %v46
  %v79 = vpack.c.b16 %v63, %v47
  %v80 = vpack.c.b16 %v64, %v48
  %v81 = vpack.c.b16 %v65, %v49
  %v82 = vpack.c.b16 %v66, %v50
  %v83 = vpack.c.b16 %v67, %v51
  %v84 = vpack.c.b16 %v68, %v52
  %v85 = vpack.c.b16 %v69, %v53
  %v86 = vpack.c.b16 %v70, %v54
  %v87 = vpack.c.b16 %v71, %v55
  %v88 = vpack.c.b16 %v72, %v56
  %v89 = vpack.c.b16 %v73, %v57
  %v90 = vpack.c.b16 %v74, %v58
  %v91 = vpack.c.b16 %v75, %v59
  %v92 = vpack.c.b16 %v76, %v60
  %vm109 = vcmask 130048
  %v111 = vsel %vm109, %v12, 0
  %113 = vmatprep.subr.bf16.mxu0 0
  %114 = vmatpush1.bf16.msra.mxu0 0
  %115 = vmatprep.subr.bf16.mxu0 0
  %116 = vmatpush1.bf16.msra.mxu0 0
  %117 = vmatprep.subr.bf16.mxu0 0
  %118 = vmatpush1.bf16.msra.mxu0 0
  %119 = vmatprep.subr.bf16.mxu0 0
  %120 = vmatpush1.bf16.msra.mxu0 0
  %121 = vmatprep.subr.bf16.mxu0 0
  %122 = vmatpush1.bf16.msra.mxu0 0
  %123 = vmatprep.subr.bf16.mxu0 0
  %124 = vmatpush1.bf16.msra.mxu0 0
  %125 = vmatprep.subr.bf16.mxu0 0
  %126 = vmatpush1.bf16.msra.mxu0 0
  %127 = vmatprep.subr.bf16.mxu0 %v78
  %128 = vmatpush1.bf16.msra.mxu0 %v77
  %129 = vmatprep.subr.bf16.mxu0 0
  %130 = vmatpush2.bf16.msra.mxu0 0
  %131 = vmatprep.subr.bf16.mxu0 0
  %132 = vmatpush2.bf16.msra.mxu0 0
  %133 = vmatprep.subr.bf16.mxu0 0
  %134 = vmatpush2.bf16.msra.mxu0 0
  %135 = vmatprep.subr.bf16.mxu0 0
  %136 = vmatpush2.bf16.msra.mxu0 0
  %137 = vmatprep.subr.bf16.mxu0 0
  %138 = vmatpush2.bf16.msra.mxu0 0
  %139 = vmatprep.subr.bf16.mxu0 0
  %140 = vmatpush2.bf16.msra.mxu0 0
  %141 = vmatprep.subr.bf16.mxu0 0
  %142 = vmatpush2.bf16.msra.mxu0 0
  %143 = vmatprep.subr.bf16.mxu0 0
  %144 = vmatpush2.bf16.msra.mxu0 0
  %145 = vmatprep.mubr.bf16.mxu0 0
  %146 = vmatmul.mubr.bf16.gmra.mxu0 %v111
  %v147 = vpop.f32.mrf.mxu0
  %v148 = vadd.f32 0.0, %v147
  %v149 = vpop.f32.mrf.mxu0
  %v150 = vadd.f32 0.0, %v149
  %v151 = vpop.f32.mrf.mxu0
  %v152 = vpop.f32.mrf.mxu0
  %153 = vdwg.mxu0
  %154 = vmatprep.subr.bf16.mxu0 0
  %155 = vmatpush1.bf16.msra.mxu0 0
  %156 = vmatprep.subr.bf16.mxu0 0
  %157 = vmatpush1.bf16.msra.mxu0 0
  %158 = vmatprep.subr.bf16.mxu0 0
  %159 = vmatpush1.bf16.msra.mxu0 0
  %160 = vmatprep.subr.bf16.mxu0 0
  %161 = vmatpush1.bf16.msra.mxu0 0
  %162 = vmatprep.subr.bf16.mxu0 0
  %163 = vmatpush1.bf16.msra.mxu0 0
  %164 = vmatprep.subr.bf16.mxu0 0
  %165 = vmatpush1.bf16.msra.mxu0 0
  %166 = vmatprep.subr.bf16.mxu0 0
  %167 = vmatpush1.bf16.msra.mxu0 0
  %168 = vmatprep.subr.bf16.mxu0 %v80
  %169 = vmatpush1.bf16.msra.mxu0 %v79
  %170 = vmatprep.subr.bf16.mxu0 0
  %171 = vmatpush2.bf16.msra.mxu0 0
  %172 = vmatprep.subr.bf16.mxu0 0
  %173 = vmatpush2.bf16.msra.mxu0 0
  %174 = vmatprep.subr.bf16.mxu0 0
  %175 = vmatpush2.bf16.msra.mxu0 0
  %176 = vmatprep.subr.bf16.mxu0 0
  %177 = vmatpush2.bf16.msra.mxu0 0
  %178 = vmatprep.subr.bf16.mxu0 0
  %179 = vmatpush2.bf16.msra.mxu0 0
  %180 = vmatprep.subr.bf16.mxu0 0
  %181 = vmatpush2.bf16.msra.mxu0 0
  %182 = vmatprep.subr.bf16.mxu0 0
  %183 = vmatpush2.bf16.msra.mxu0 0
  %184 = vmatprep.subr.bf16.mxu0 0
  %185 = vmatpush2.bf16.msra.mxu0 0
  %186 = vmatprep.mubr.bf16.mxu0 0
  %187 = vmatmul.mubr.bf16.gmra.mxu0 %v111
  %v188 = vpop.f32.mrf.mxu0
  %v189 = vadd.f32 0.0, %v188
  %v190 = vpop.f32.mrf.mxu0
  %v191 = vadd.f32 0.0, %v190
  %v192 = vpop.f32.mrf.mxu0
  %v193 = vpop.f32.mrf.mxu0
  %194 = vdwg.mxu0
  %195 = vmatprep.subr.bf16.mxu0 0
  %196 = vmatpush1.bf16.msra.mxu0 0
  %197 = vmatprep.subr.bf16.mxu0 0
  %198 = vmatpush1.bf16.msra.mxu0 0
  %199 = vmatprep.subr.bf16.mxu0 0
  %200 = vmatpush1.bf16.msra.mxu0 0
  %201 = vmatprep.subr.bf16.mxu0 0
  %202 = vmatpush1.bf16.msra.mxu0 0
  %203 = vmatprep.subr.bf16.mxu0 0
  %204 = vmatpush1.bf16.msra.mxu0 0
  %205 = vmatprep.subr.bf16.mxu0 0
  %206 = vmatpush1.bf16.msra.mxu0 0
  %207 = vmatprep.subr.bf16.mxu0 0
  %208 = vmatpush1.bf16.msra.mxu0 0
  %209 = vmatprep.subr.bf16.mxu0 %v82
  %210 = vmatpush1.bf16.msra.mxu0 %v81
  %211 = vmatprep.subr.bf16.mxu0 0
  %212 = vmatpush2.bf16.msra.mxu0 0
  %213 = vmatprep.subr.bf16.mxu0 0
  %214 = vmatpush2.bf16.msra.mxu0 0
  %215 = vmatprep.subr.bf16.mxu0 0
  %216 = vmatpush2.bf16.msra.mxu0 0
  %217 = vmatprep.subr.bf16.mxu0 0
  %218 = vmatpush2.bf16.msra.mxu0 0
  %219 = vmatprep.subr.bf16.mxu0 0
  %220 = vmatpush2.bf16.msra.mxu0 0
  %221 = vmatprep.subr.bf16.mxu0 0
  %222 = vmatpush2.bf16.msra.mxu0 0
  %223 = vmatprep.subr.bf16.mxu0 0
  %224 = vmatpush2.bf16.msra.mxu0 0
  %225 = vmatprep.subr.bf16.mxu0 0
  %226 = vmatpush2.bf16.msra.mxu0 0
  %227 = vmatprep.mubr.bf16.mxu0 0
  %228 = vmatmul.mubr.bf16.gmra.mxu0 %v111
  %v229 = vpop.f32.mrf.mxu0
  %v230 = vadd.f32 0.0, %v229
  %v231 = vpop.f32.mrf.mxu0
  %v232 = vadd.f32 0.0, %v231
  %v233 = vpop.f32.mrf.mxu0
  %v234 = vpop.f32.mrf.mxu0
  %235 = vdwg.mxu0
  %236 = vmatprep.subr.bf16.mxu0 0
  %237 = vmatpush1.bf16.msra.mxu0 0
  %238 = vmatprep.subr.bf16.mxu0 0
  %239 = vmatpush1.bf16.msra.mxu0 0
  %240 = vmatprep.subr.bf16.mxu0 0
  %241 = vmatpush1.bf16.msra.mxu0 0
  %242 = vmatprep.subr.bf16.mxu0 0
  %243 = vmatpush1.bf16.msra.mxu0 0
  %244 = vmatprep.subr.bf16.mxu0 0
  %245 = vmatpush1.bf16.msra.mxu0 0
  %246 = vmatprep.subr.bf16.mxu0 0
  %247 = vmatpush1.bf16.msra.mxu0 0
  %248 = vmatprep.subr.bf16.mxu0 0
  %249 = vmatpush1.bf16.msra.mxu0 0
  %250 = vmatprep.subr.bf16.mxu0 %v84
  %251 = vmatpush1.bf16.msra.mxu0 %v83
  %252 = vmatprep.subr.bf16.mxu0 0
  %253 = vmatpush2.bf16.msra.mxu0 0
  %254 = vmatprep.subr.bf16.mxu0 0
  %255 = vmatpush2.bf16.msra.mxu0 0
  %256 = vmatprep.subr.bf16.mxu0 0
  %257 = vmatpush2.bf16.msra.mxu0 0
  %258 = vmatprep.subr.bf16.mxu0 0
  %259 = vmatpush2.bf16.msra.mxu0 0
  %260 = vmatprep.subr.bf16.mxu0 0
  %261 = vmatpush2.bf16.msra.mxu0 0
  %262 = vmatprep.subr.bf16.mxu0 0
  %263 = vmatpush2.bf16.msra.mxu0 0
  %264 = vmatprep.subr.bf16.mxu0 0
  %265 = vmatpush2.bf16.msra.mxu0 0
  %266 = vmatprep.subr.bf16.mxu0 0
  %267 = vmatpush2.bf16.msra.mxu0 0
  %268 = vmatprep.mubr.bf16.mxu0 0
  %269 = vmatmul.mubr.bf16.gmra.mxu0 %v111
  %v270 = vpop.f32.mrf.mxu0
  %v271 = vadd.f32 0.0, %v270
  %v272 = vpop.f32.mrf.mxu0
  %v273 = vadd.f32 0.0, %v272
  %v274 = vpop.f32.mrf.mxu0
  %v275 = vpop.f32.mrf.mxu0
  %276 = vdwg.mxu0
  %277 = vmatprep.subr.bf16.mxu0 0
  %278 = vmatpush1.bf16.msra.mxu0 0
  %279 = vmatprep.subr.bf16.mxu0 0
  %280 = vmatpush1.bf16.msra.mxu0 0
  %281 = vmatprep.subr.bf16.mxu0 0
  %282 = vmatpush1.bf16.msra.mxu0 0
  %283 = vmatprep.subr.bf16.mxu0 0
  %284 = vmatpush1.bf16.msra.mxu0 0
  %285 = vmatprep.subr.bf16.mxu0 0
  %286 = vmatpush1.bf16.msra.mxu0 0
  %287 = vmatprep.subr.bf16.mxu0 0
  %288 = vmatpush1.bf16.msra.mxu0 0
  %289 = vmatprep.subr.bf16.mxu0 0
  %290 = vmatpush1.bf16.msra.mxu0 0
  %291 = vmatprep.subr.bf16.mxu0 %v86
  %292 = vmatpush1.bf16.msra.mxu0 %v85
  %293 = vmatprep.subr.bf16.mxu0 0
  %294 = vmatpush2.bf16.msra.mxu0 0
  %295 = vmatprep.subr.bf16.mxu0 0
  %296 = vmatpush2.bf16.msra.mxu0 0
  %297 = vmatprep.subr.bf16.mxu0 0
  %298 = vmatpush2.bf16.msra.mxu0 0
  %299 = vmatprep.subr.bf16.mxu0 0
  %300 = vmatpush2.bf16.msra.mxu0 0
  %301 = vmatprep.subr.bf16.mxu0 0
  %302 = vmatpush2.bf16.msra.mxu0 0
  %303 = vmatprep.subr.bf16.mxu0 0
  %304 = vmatpush2.bf16.msra.mxu0 0
  %305 = vmatprep.subr.bf16.mxu0 0
  %306 = vmatpush2.bf16.msra.mxu0 0
  %307 = vmatprep.subr.bf16.mxu0 0
  %308 = vmatpush2.bf16.msra.mxu0 0
  %309 = vmatprep.mubr.bf16.mxu0 0
  %310 = vmatmul.mubr.bf16.gmra.mxu0 %v111
  %v311 = vpop.f32.mrf.mxu0
  %v312 = vadd.f32 0.0, %v311
  %v313 = vpop.f32.mrf.mxu0
  %v314 = vadd.f32 0.0, %v313
  %v315 = vpop.f32.mrf.mxu0
  %v316 = vpop.f32.mrf.mxu0
  %317 = vdwg.mxu0
  %318 = vmatprep.subr.bf16.mxu0 0
  %319 = vmatpush1.bf16.msra.mxu0 0
  %320 = vmatprep.subr.bf16.mxu0 0
  %321 = vmatpush1.bf16.msra.mxu0 0
  %322 = vmatprep.subr.bf16.mxu0 0
  %323 = vmatpush1.bf16.msra.mxu0 0
  %324 = vmatprep.subr.bf16.mxu0 0
  %325 = vmatpush1.bf16.msra.mxu0 0
  %326 = vmatprep.subr.bf16.mxu0 0
  %327 = vmatpush1.bf16.msra.mxu0 0
  %328 = vmatprep.subr.bf16.mxu0 0
  %329 = vmatpush1.bf16.msra.mxu0 0
  %330 = vmatprep.subr.bf16.mxu0 0
  %331 = vmatpush1.bf16.msra.mxu0 0
  %332 = vmatprep.subr.bf16.mxu0 %v88
  %333 = vmatpush1.bf16.msra.mxu0 %v87
  %334 = vmatprep.subr.bf16.mxu0 0
  %335 = vmatpush2.bf16.msra.mxu0 0
  %336 = vmatprep.subr.bf16.mxu0 0
  %337 = vmatpush2.bf16.msra.mxu0 0
  %338 = vmatprep.subr.bf16.mxu0 0
  %339 = vmatpush2.bf16.msra.mxu0 0
  %340 = vmatprep.subr.bf16.mxu0 0
  %341 = vmatpush2.bf16.msra.mxu0 0
  %342 = vmatprep.subr.bf16.mxu0 0
  %343 = vmatpush2.bf16.msra.mxu0 0
  %344 = vmatprep.subr.bf16.mxu0 0
  %345 = vmatpush2.bf16.msra.mxu0 0
  %346 = vmatprep.subr.bf16.mxu0 0
  %347 = vmatpush2.bf16.msra.mxu0 0
  %348 = vmatprep.subr.bf16.mxu0 0
  %349 = vmatpush2.bf16.msra.mxu0 0
  %350 = vmatprep.mubr.bf16.mxu0 0
  %351 = vmatmul.mubr.bf16.gmra.mxu0 %v111
  %v352 = vpop.f32.mrf.mxu0
  %v353 = vadd.f32 0.0, %v352
  %v354 = vpop.f32.mrf.mxu0
  %v355 = vadd.f32 0.0, %v354
  %v356 = vpop.f32.mrf.mxu0
  %v357 = vpop.f32.mrf.mxu0
  %358 = vdwg.mxu0
  %359 = vmatprep.subr.bf16.mxu0 0
  %360 = vmatpush1.bf16.msra.mxu0 0
  %361 = vmatprep.subr.bf16.mxu0 0
  %362 = vmatpush1.bf16.msra.mxu0 0
  %363 = vmatprep.subr.bf16.mxu0 0
  %364 = vmatpush1.bf16.msra.mxu0 0
  %365 = vmatprep.subr.bf16.mxu0 0
  %366 = vmatpush1.bf16.msra.mxu0 0
  %367 = vmatprep.subr.bf16.mxu0 0
  %368 = vmatpush1.bf16.msra.mxu0 0
  %369 = vmatprep.subr.bf16.mxu0 0
  %370 = vmatpush1.bf16.msra.mxu0 0
  %371 = vmatprep.subr.bf16.mxu0 0
  %372 = vmatpush1.bf16.msra.mxu0 0
  %373 = vmatprep.subr.bf16.mxu0 %v90
  %374 = vmatpush1.bf16.msra.mxu0 %v89
  %375 = vmatprep.subr.bf16.mxu0 0
  %376 = vmatpush2.bf16.msra.mxu0 0
  %377 = vmatprep.subr.bf16.mxu0 0
  %378 = vmatpush2.bf16.msra.mxu0 0
  %379 = vmatprep.subr.bf16.mxu0 0
  %380 = vmatpush2.bf16.msra.mxu0 0
  %381 = vmatprep.subr.bf16.mxu0 0
  %382 = vmatpush2.bf16.msra.mxu0 0
  %383 = vmatprep.subr.bf16.mxu0 0
  %384 = vmatpush2.bf16.msra.mxu0 0
  %385 = vmatprep.subr.bf16.mxu0 0
  %386 = vmatpush2.bf16.msra.mxu0 0
  %387 = vmatprep.subr.bf16.mxu0 0
  %388 = vmatpush2.bf16.msra.mxu0 0
  %389 = vmatprep.subr.bf16.mxu0 0
  %390 = vmatpush2.bf16.msra.mxu0 0
  %391 = vmatprep.mubr.bf16.mxu0 0
  %392 = vmatmul.mubr.bf16.gmra.mxu0 %v111
  %v393 = vpop.f32.mrf.mxu0
  %v394 = vadd.f32 0.0, %v393
  %v395 = vpop.f32.mrf.mxu0
  %v396 = vadd.f32 0.0, %v395
  %v397 = vpop.f32.mrf.mxu0
  %v398 = vpop.f32.mrf.mxu0
  %399 = vdwg.mxu0
  %400 = vmatprep.subr.bf16.mxu0 0
  %401 = vmatpush1.bf16.msra.mxu0 0
  %402 = vmatprep.subr.bf16.mxu0 0
  %403 = vmatpush1.bf16.msra.mxu0 0
  %404 = vmatprep.subr.bf16.mxu0 0
  %405 = vmatpush1.bf16.msra.mxu0 0
  %406 = vmatprep.subr.bf16.mxu0 0
  %407 = vmatpush1.bf16.msra.mxu0 0
  %408 = vmatprep.subr.bf16.mxu0 0
  %409 = vmatpush1.bf16.msra.mxu0 0
  %410 = vmatprep.subr.bf16.mxu0 0
  %411 = vmatpush1.bf16.msra.mxu0 0
  %412 = vmatprep.subr.bf16.mxu0 0
  %413 = vmatpush1.bf16.msra.mxu0 0
  %414 = vmatprep.subr.bf16.mxu0 %v92
  %415 = vmatpush1.bf16.msra.mxu0 %v91
  %416 = vmatprep.subr.bf16.mxu0 0
  %417 = vmatpush2.bf16.msra.mxu0 0
  %418 = vmatprep.subr.bf16.mxu0 0
  %419 = vmatpush2.bf16.msra.mxu0 0
  %420 = vmatprep.subr.bf16.mxu0 0
  %421 = vmatpush2.bf16.msra.mxu0 0
  %422 = vmatprep.subr.bf16.mxu0 0
  %423 = vmatpush2.bf16.msra.mxu0 0
  %424 = vmatprep.subr.bf16.mxu0 0
  %425 = vmatpush2.bf16.msra.mxu0 0
  %426 = vmatprep.subr.bf16.mxu0 0
  %427 = vmatpush2.bf16.msra.mxu0 0
  %428 = vmatprep.subr.bf16.mxu0 0
  %429 = vmatpush2.bf16.msra.mxu0 0
  %430 = vmatprep.subr.bf16.mxu0 0
  %431 = vmatpush2.bf16.msra.mxu0 0
  %432 = vmatprep.mubr.bf16.mxu0 0
  %433 = vmatmul.mubr.bf16.gmra.mxu0 %v111
  %v434 = vpop.f32.mrf.mxu0
  %v435 = vadd.f32 0.0, %v434
  %v436 = vpop.f32.mrf.mxu0
  %v437 = vadd.f32 0.0, %v436
  %v438 = vpop.f32.mrf.mxu0
  %v439 = vpop.f32.mrf.mxu0
  %440 = vdwg.mxu0
  %vm441 = vcmp.gt.f32.partialorder %v148, 0.0
  %vm442 = vcmp.gt.f32.partialorder %v150, 0.0
  %vm443 = vcmp.gt.f32.partialorder %v189, 0.0
  %vm444 = vcmp.gt.f32.partialorder %v191, 0.0
  %vm445 = vcmp.gt.f32.partialorder %v230, 0.0
  %vm446 = vcmp.gt.f32.partialorder %v232, 0.0
  %vm447 = vcmp.gt.f32.partialorder %v271, 0.0
  %vm448 = vcmp.gt.f32.partialorder %v273, 0.0
  %vm449 = vcmp.gt.f32.partialorder %v312, 0.0
  %vm450 = vcmp.gt.f32.partialorder %v314, 0.0
  %vm451 = vcmp.gt.f32.partialorder %v353, 0.0
  %vm452 = vcmp.gt.f32.partialorder %v355, 0.0
  %vm453 = vcmp.gt.f32.partialorder %v394, 0.0
  %vm454 = vcmp.gt.f32.partialorder %v396, 0.0
  %vm455 = vcmp.gt.f32.partialorder %v435, 0.0
  %vm456 = vcmp.gt.f32.partialorder %v437, 0.0
  %v457 = vmul.f32 %v148, 0.2
  %v458 = vmul.f32 %v150, 0.2
  %v459 = vmul.f32 %v189, 0.2
  %v460 = vmul.f32 %v191, 0.2
  %v461 = vmul.f32 %v230, 0.2
  %v462 = vmul.f32 %v232, 0.2
  %v463 = vmul.f32 %v271, 0.2
  %v464 = vmul.f32 %v273, 0.2
  %v465 = vmul.f32 %v312, 0.2
  %v466 = vmul.f32 %v314, 0.2
  %v467 = vmul.f32 %v353, 0.2
  %v468 = vmul.f32 %v355, 0.2
  %v469 = vmul.f32 %v394, 0.2
  %v470 = vmul.f32 %v396, 0.2
  %v471 = vmul.f32 %v435, 0.2
  %v472 = vmul.f32 %v437, 0.2
  %v473 = vsel %vm441, %v148, %v457
  %v474 = vsel %vm442, %v150, %v458
  %v475 = vsel %vm443, %v189, %v459
  %v476 = vsel %vm444, %v191, %v460
  %v477 = vsel %vm445, %v230, %v461
  %v478 = vsel %vm446, %v232, %v462
  %v479 = vsel %vm447, %v271, %v463
  %v480 = vsel %vm448, %v273, %v464
  %v481 = vsel %vm449, %v312, %v465
  %v482 = vsel %vm450, %v314, %v466
  %v483 = vsel %vm451, %v353, %v467
  %v484 = vsel %vm452, %v355, %v468
  %v485 = vsel %vm453, %v394, %v469
  %v486 = vsel %vm454, %v396, %v470
  %v487 = vsel %vm455, %v435, %v471
  %v488 = vsel %vm456, %v437, %v472
  %v489 = vpack.c.bf16 %v473, %v473
  %v490 = vpack.c.bf16 %v474, %v474
  %v491 = vpack.c.bf16 %v475, %v475
  %v492 = vpack.c.bf16 %v476, %v476
  %v493 = vpack.c.bf16 %v477, %v477
  %v494 = vpack.c.bf16 %v478, %v478
  %v495 = vpack.c.bf16 %v479, %v479
  %v496 = vpack.c.bf16 %v480, %v480
  %v497 = vpack.c.bf16 %v481, %v481
  %v498 = vpack.c.bf16 %v482, %v482
  %v499 = vpack.c.bf16 %v483, %v483
  %v500 = vpack.c.bf16 %v484, %v484
  %v501 = vpack.c.bf16 %v485, %v485
  %v502 = vpack.c.bf16 %v486, %v486
  %v503 = vpack.c.bf16 %v487, %v487
  %v504 = vpack.c.bf16 %v488, %v488
  %v521 = vunpack.c.l.b16 %v489
  %v522 = vunpack.c.l.b16 %v490
  %v523 = vunpack.c.l.b16 %v491
  %v524 = vunpack.c.l.b16 %v492
  %v525 = vunpack.c.l.b16 %v493
  %v526 = vunpack.c.l.b16 %v494
  %v527 = vunpack.c.l.b16 %v495
  %v528 = vunpack.c.l.b16 %v496
  %v529 = vunpack.c.l.b16 %v497
  %v530 = vunpack.c.l.b16 %v498
  %v531 = vunpack.c.l.b16 %v499
  %v532 = vunpack.c.l.b16 %v500
  %v533 = vunpack.c.l.b16 %v501
  %v534 = vunpack.c.l.b16 %v502
  %v535 = vunpack.c.l.b16 %v503
  %v536 = vunpack.c.l.b16 %v504
  %v537 = vpack.c.b16 %v522, %v521
  %v538 = vpack.c.b16 %v524, %v523
  %v539 = vpack.c.b16 %v526, %v525
  %v540 = vpack.c.b16 %v528, %v527
  %v541 = vpack.c.b16 %v530, %v529
  %v542 = vpack.c.b16 %v532, %v531
  %v543 = vpack.c.b16 %v534, %v533
  %v544 = vpack.c.b16 %v536, %v535
  %553 = vst [vmem:[%s2] sm:$0xff] %v537
  %554 = vst [vmem:[%s2 + $0x8] sm:$0xff] %v538
  %555 = vst [vmem:[%s2 + $0x10] sm:$0xff] %v539
  %556 = vst [vmem:[%s2 + $0x18] sm:$0xff] %v540
  %557 = vst [vmem:[%s2 + $0x20] sm:$0xff] %v541
  %558 = vst [vmem:[%s2 + $0x28] sm:$0xff] %v542
  %559 = vst [vmem:[%s2 + $0x30] sm:$0xff] %v543
  %560 = vst [vmem:[%s2 + $0x38] sm:$0xff] %v544
  // Predicated region
  $region10: #{dcgan_d_forward.4} parent=0 // pred_check
    _
  $region11: #{dcgan_d_forward.4} parent=0 // pred_check_branch
    %562 = sbr.rel (0) target = $region13
  $region12: #{dcgan_d_forward.4} parent=0 // pred_region
    _
  $region13: #{dcgan_d_forward.4} parent=0 // pred_fallthru
    _
  // Predicated region
  $region14: #{dcgan_d_forward.4} parent=0 // pred_check
    _
  $region15: #{dcgan_d_forward.4} parent=0 // pred_check_branch
    %564 = sbr.rel (0) target = $region17
  $region16: #{dcgan_d_forward.4} parent=0 // pred_region
    _
  $region17: #{dcgan_d_forward.4} parent=0 // pred_fallthru
    _

// kernel: dcgan_d_forward.5
$region0: #{dcgan_d_forward.5}
  #allocation0 [shape = 'u32[]', space=smem, size = 0x4, offset = 0x4, fixed_abs, tag = 'smem constant byte address 0x4 - core index']
  #allocation1 [shape = 'u32[144,128]{1,0:T(1,128)}', space=vmem, size = 0x12000, scoped, tag = 'internal scratch']
  %s0 = inlined_call_operand.vmem [shape: bf16[16,128], index: 0, kind: input, shape index: {}]
  %s1 = inlined_call_operand.vmem [shape: bf16[128,512], index: 1, kind: input, shape index: {}]
  %s2 = inlined_call_operand.vmem [shape: f32[16,1], index: 2, kind: input, shape index: {}]
  %s3 = inlined_call_operand.vmem [shape: f32[16,1], index: 3, kind: input, shape index: {}]
  %s4 = inlined_call_operand.vmem [shape: bf16[16,512], index: 4, kind: output, shape index: {}]
  %s5 = sld [smem:[#allocation0]]
  $region26: #{dcgan_d_forward.5} parent=0
    _
  %s7 = ssub.s32 1, %s5
  %s8 = scalar_select 0, %s7, %s5
  // Predicated region
  $region2: #{dcgan_d_forward.5} parent=0 // pred_check
    _
  $region3: #{dcgan_d_forward.5} parent=0 // pred_check_branch
    %10 = sbr.rel (0) target = $region5
  $region4: #{dcgan_d_forward.5} parent=0 // pred_region
    _
  $region5: #{dcgan_d_forward.5} parent=0 // pred_fallthru
    _
  // Predicated region
  $region6: #{dcgan_d_forward.5} parent=0 // pred_check
    _
  $region7: #{dcgan_d_forward.5} parent=0 // pred_check_branch
    %12 = sbr.rel (0) target = $region9
  $region8: #{dcgan_d_forward.5} parent=0 // pred_region
    _
  $region9: #{dcgan_d_forward.5} parent=0 // pred_fallthru
    _
  // Predicated region
  $region10: #{dcgan_d_forward.5} parent=0 // pred_check
    _
  $region11: #{dcgan_d_forward.5} parent=0 // pred_check_branch
    %14 = sbr.rel (0) target = $region13
  $region12: #{dcgan_d_forward.5} parent=0 // pred_region
    _
  $region13: #{dcgan_d_forward.5} parent=0 // pred_fallthru
    _
  // Predicated region
  $region14: #{dcgan_d_forward.5} parent=0 // pred_check
    _
  $region15: #{dcgan_d_forward.5} parent=0 // pred_check_branch
    %16 = sbr.rel (0) target = $region17
  $region16: #{dcgan_d_forward.5} parent=0 // pred_region
    _
  $region17: #{dcgan_d_forward.5} parent=0 // pred_fallthru
    _
  %v18 = vld [vmem:[%s0] sm:$0xf]
  %v19 = vld [vmem:[%s0 + $0x4] sm:$0xf]
  %v20 = vld [vmem:[%s1] sm:$0xff]
  %v21 = vld [vmem:[%s1 + $0x8] sm:$0xff]
  %v22 = vld [vmem:[%s1 + $0x10] sm:$0xff]
  %v23 = vld [vmem:[%s1 + $0x18] sm:$0xff]
  %v24 = vld [vmem:[%s1 + $0x20] sm:$0xff]
  %v25 = vld [vmem:[%s1 + $0x28] sm:$0xff]
  %v26 = vld [vmem:[%s1 + $0x30] sm:$0xff]
  %v27 = vld [vmem:[%s1 + $0x38] sm:$0xff]
  %v28 = vld [vmem:[%s1 + $0x40] sm:$0xff]
  %v29 = vld [vmem:[%s1 + $0x48] sm:$0xff]
  %v30 = vld [vmem:[%s1 + $0x50] sm:$0xff]
  %v31 = vld [vmem:[%s1 + $0x58] sm:$0xff]
  %v32 = vld [vmem:[%s1 + $0x60] sm:$0xff]
  %v33 = vld [vmem:[%s1 + $0x68] sm:$0xff]
  %v34 = vld [vmem:[%s1 + $0x70] sm:$0xff]
  %v35 = vld [vmem:[%s1 + $0x78] sm:$0xff]
  %v36 = vld [vmem:[%s1 + $0x80] sm:$0xff]
  %v37 = vld [vmem:[%s1 + $0x88] sm:$0xff]
  %v38 = vld [vmem:[%s1 + $0x90] sm:$0xff]
  %v39 = vld [vmem:[%s1 + $0x98] sm:$0xff]
  %v40 = vld [vmem:[%s1 + $0xa0] sm:$0xff]
  %v41 = vld [vmem:[%s1 + $0xa8] sm:$0xff]
  %v42 = vld [vmem:[%s1 + $0xb0] sm:$0xff]
  %v43 = vld [vmem:[%s1 + $0xb8] sm:$0xff]
  %v44 = vld [vmem:[%s1 + $0xc0] sm:$0xff]
  %v45 = vld [vmem:[%s1 + $0xc8] sm:$0xff]
  %v46 = vld [vmem:[%s1 + $0xd0] sm:$0xff]
  %v47 = vld [vmem:[%s1 + $0xd8] sm:$0xff]
  %v48 = vld [vmem:[%s1 + $0xe0] sm:$0xff]
  %v49 = vld [vmem:[%s1 + $0xe8] sm:$0xff]
  %v50 = vld [vmem:[%s1 + $0xf0] sm:$0xff]
  %v51 = vld [vmem:[%s1 + $0xf8] sm:$0xff]
  %v54 = vunpack.c.l.b16 %v18
  %v55 = vunpack.c.l.b16 %v19
  %v56 = vpack.c.b16 %v55, %v54
  %v90 = vunpack.c.l.b16 %v20
  %v91 = vunpack.c.h.b16 %v20
  %v92 = vunpack.c.l.b16 %v21
  %v93 = vunpack.c.h.b16 %v21
  %v94 = vunpack.c.l.b16 %v22
  %v95 = vunpack.c.h.b16 %v22
  %v96 = vunpack.c.l.b16 %v23
  %v97 = vunpack.c.h.b16 %v23
  %v98 = vunpack.c.l.b16 %v24
  %v99 = vunpack.c.h.b16 %v24
  %v100 = vunpack.c.l.b16 %v25
  %v101 = vunpack.c.h.b16 %v25
  %v102 = vunpack.c.l.b16 %v26
  %v103 = vunpack.c.h.b16 %v26
  %v104 = vunpack.c.l.b16 %v27
  %v105 = vunpack.c.h.b16 %v27
  %v106 = vunpack.c.l.b16 %v28
  %v107 = vunpack.c.h.b16 %v28
  %v108 = vunpack.c.l.b16 %v29
  %v109 = vunpack.c.h.b16 %v29
  %v110 = vunpack.c.l.b16 %v30
  %v111 = vunpack.c.h.b16 %v30
  %v112 = vunpack.c.l.b16 %v31
  %v113 = vunpack.c.h.b16 %v31
  %v114 = vunpack.c.l.b16 %v32
  %v115 = vunpack.c.h.b16 %v32
  %v116 = vunpack.c.l.b16 %v33
  %v117 = vunpack.c.h.b16 %v33
  %v118 = vunpack.c.l.b16 %v34
  %v119 = vunpack.c.h.b16 %v34
  %v120 = vunpack.c.l.b16 %v35
  %v121 = vunpack.c.h.b16 %v35
  %v122 = vunpack.c.l.b16 %v36
  %v123 = vunpack.c.h.b16 %v36
  %v124 = vunpack.c.l.b16 %v37
  %v125 = vunpack.c.h.b16 %v37
  %v126 = vunpack.c.l.b16 %v38
  %v127 = vunpack.c.h.b16 %v38
  %v128 = vunpack.c.l.b16 %v39
  %v129 = vunpack.c.h.b16 %v39
  %v130 = vunpack.c.l.b16 %v40
  %v131 = vunpack.c.h.b16 %v40
  %v132 = vunpack.c.l.b16 %v41
  %v133 = vunpack.c.h.b16 %v41
  %v134 = vunpack.c.l.b16 %v42
  %v135 = vunpack.c.h.b16 %v42
  %v136 = vunpack.c.l.b16 %v43
  %v137 = vunpack.c.h.b16 %v43
  %v138 = vunpack.c.l.b16 %v44
  %v139 = vunpack.c.h.b16 %v44
  %v140 = vunpack.c.l.b16 %v45
  %v141 = vunpack.c.h.b16 %v45
  %v142 = vunpack.c.l.b16 %v46
  %v143 = vunpack.c.h.b16 %v46
  %v144 = vunpack.c.l.b16 %v47
  %v145 = vunpack.c.h.b16 %v47
  %v146 = vunpack.c.l.b16 %v48
  %v147 = vunpack.c.h.b16 %v48
  %v148 = vunpack.c.l.b16 %v49
  %v149 = vunpack.c.h.b16 %v49
  %v150 = vunpack.c.l.b16 %v50
  %v151 = vunpack.c.h.b16 %v50
  %v152 = vunpack.c.l.b16 %v51
  %v153 = vunpack.c.h.b16 %v51
  %v154 = vpack.c.b16 %v94, %v90
  %v155 = vpack.c.b16 %v95, %v91
  %v156 = vpack.c.b16 %v96, %v92
  %v157 = vpack.c.b16 %v97, %v93
  %v158 = vpack.c.b16 %v102, %v98
  %v159 = vpack.c.b16 %v103, %v99
  %v160 = vpack.c.b16 %v104, %v100
  %v161 = vpack.c.b16 %v105, %v101
  %v162 = vpack.c.b16 %v110, %v106
  %v163 = vpack.c.b16 %v111, %v107
  %v164 = vpack.c.b16 %v112, %v108
  %v165 = vpack.c.b16 %v113, %v109
  %v166 = vpack.c.b16 %v118, %v114
  %v167 = vpack.c.b16 %v119, %v115
  %v168 = vpack.c.b16 %v120, %v116
  %v169 = vpack.c.b16 %v121, %v117
  %v170 = vpack.c.b16 %v126, %v122
  %v171 = vpack.c.b16 %v127, %v123
  %v172 = vpack.c.b16 %v128, %v124
  %v173 = vpack.c.b16 %v129, %v125
  %v174 = vpack.c.b16 %v134, %v130
  %v175 = vpack.c.b16 %v135, %v131
  %v176 = vpack.c.b16 %v136, %v132
  %v177 = vpack.c.b16 %v137, %v133
  %v178 = vpack.c.b16 %v142, %v138
  %v179 = vpack.c.b16 %v143, %v139
  %v180 = vpack.c.b16 %v144, %v140
  %v181 = vpack.c.b16 %v145, %v141
  %v182 = vpack.c.b16 %v150, %v146
  %v183 = vpack.c.b16 %v151, %v147
  %v184 = vpack.c.b16 %v152, %v148
  %v185 = vpack.c.b16 %v153, %v149
  %218 = vmatprep.subr.bf16.mxu0 %v183
  %219 = vmatpush1.bf16.msra.mxu0 %v182
  %220 = vmatprep.subr.bf16.mxu0 %v179
  %221 = vmatpush1.bf16.msra.mxu0 %v178
  %222 = vmatprep.subr.bf16.mxu0 %v175
  %223 = vmatpush1.bf16.msra.mxu0 %v174
  %224 = vmatprep.subr.bf16.mxu0 %v171
  %225 = vmatpush1.bf16.msra.mxu0 %v170
  %226 = vmatprep.subr.bf16.mxu0 %v167
  %227 = vmatpush1.bf16.msra.mxu0 %v166
  %228 = vmatprep.subr.bf16.mxu0 %v163
  %229 = vmatpush1.bf16.msra.mxu0 %v162
  %230 = vmatprep.subr.bf16.mxu0 %v159
  %231 = vmatpush1.bf16.msra.mxu0 %v158
  %232 = vmatprep.subr.bf16.mxu0 %v155
  %233 = vmatpush1.bf16.msra.mxu0 %v154
  %234 = vmatprep.subr.bf16.mxu0 0
  %235 = vmatpush2.bf16.msra.mxu0 0
  %236 = vmatprep.subr.bf16.mxu0 0
  %237 = vmatpush2.bf16.msra.mxu0 0
  %238 = vmatprep.subr.bf16.mxu0 0
  %239 = vmatpush2.bf16.msra.mxu0 0
  %240 = vmatprep.subr.bf16.mxu0 0
  %241 = vmatpush2.bf16.msra.mxu0 0
  %242 = vmatprep.subr.bf16.mxu0 0
  %243 = vmatpush2.bf16.msra.mxu0 0
  %244 = vmatprep.subr.bf16.mxu0 0
  %245 = vmatpush2.bf16.msra.mxu0 0
  %246 = vmatprep.subr.bf16.mxu0 0
  %247 = vmatpush2.bf16.msra.mxu0 0
  %248 = vmatprep.subr.bf16.mxu0 0
  %249 = vmatpush2.bf16.msra.mxu0 0
  %250 = vmatprep.mubr.bf16.mxu0 0
  %251 = vmatmul.mubr.bf16.gmra.mxu0 %v56
  %v252 = vpop.f32.mrf.mxu0
  %v253 = vadd.f32 0.0, %v252
  %v254 = vpop.f32.mrf.mxu0
  %v255 = vadd.f32 0.0, %v254
  %v256 = vpop.f32.mrf.mxu0
  %v257 = vadd.f32 0.0, %v256
  %v258 = vpop.f32.mrf.mxu0
  %v259 = vadd.f32 0.0, %v258
  %260 = vdwg.mxu0
  %261 = vmatprep.subr.bf16.mxu0 %v185
  %262 = vmatpush1.bf16.msra.mxu0 %v184
  %263 = vmatprep.subr.bf16.mxu0 %v181
  %264 = vmatpush1.bf16.msra.mxu0 %v180
  %265 = vmatprep.subr.bf16.mxu0 %v177
  %266 = vmatpush1.bf16.msra.mxu0 %v176
  %267 = vmatprep.subr.bf16.mxu0 %v173
  %268 = vmatpush1.bf16.msra.mxu0 %v172
  %269 = vmatprep.subr.bf16.mxu0 %v169
  %270 = vmatpush1.bf16.msra.mxu0 %v168
  %271 = vmatprep.subr.bf16.mxu0 %v165
  %272 = vmatpush1.bf16.msra.mxu0 %v164
  %273 = vmatprep.subr.bf16.mxu0 %v161
  %274 = vmatpush1.bf16.msra.mxu0 %v160
  %275 = vmatprep.subr.bf16.mxu0 %v157
  %276 = vmatpush1.bf16.msra.mxu0 %v156
  %277 = vmatprep.subr.bf16.mxu0 0
  %278 = vmatpush2.bf16.msra.mxu0 0
  %279 = vmatprep.subr.bf16.mxu0 0
  %280 = vmatpush2.bf16.msra.mxu0 0
  %281 = vmatprep.subr.bf16.mxu0 0
  %282 = vmatpush2.bf16.msra.mxu0 0
  %283 = vmatprep.subr.bf16.mxu0 0
  %284 = vmatpush2.bf16.msra.mxu0 0
  %285 = vmatprep.subr.bf16.mxu0 0
  %286 = vmatpush2.bf16.msra.mxu0 0
  %287 = vmatprep.subr.bf16.mxu0 0
  %288 = vmatpush2.bf16.msra.mxu0 0
  %289 = vmatprep.subr.bf16.mxu0 0
  %290 = vmatpush2.bf16.msra.mxu0 0
  %291 = vmatprep.subr.bf16.mxu0 0
  %292 = vmatpush2.bf16.msra.mxu0 0
  %293 = vmatprep.mubr.bf16.mxu0 0
  %294 = vmatmul.mubr.bf16.gmra.mxu0 %v56
  %v295 = vpop.f32.mrf.mxu0
  %v296 = vadd.f32 0.0, %v295
  %v297 = vpop.f32.mrf.mxu0
  %v298 = vadd.f32 0.0, %v297
  %v299 = vpop.f32.mrf.mxu0
  %v300 = vadd.f32 0.0, %v299
  %v301 = vpop.f32.mrf.mxu0
  %v302 = vadd.f32 0.0, %v301
  %303 = vdwg.mxu0
  %v304 = vadd.f32 %v253, %v255
  %v305 = vadd.f32 %v304, %v296
  %v306 = vadd.f32 %v305, %v298
  %307 = vadd.xlane.f32.xlu0 %v306
  %v308 = vpop.xlane.xlu0 %307
  %v309 = vadd.f32 %v257, %v259
  %v310 = vadd.f32 %v309, %v300
  %v311 = vadd.f32 %v310, %v302
  %312 = vadd.xlane.f32.xlu0 %v311
  %v313 = vpop.xlane.xlu0 %312
  %v314 = vrcp.pop 512.0
  %v315 = vmul.f32 %v308, %v314
  %v316 = vmul.f32 %v313, %v314
  %v317 = vmul.f32 %v253, %v253
  %v318 = vmul.f32 %v255, %v255
  %v319 = vmul.f32 %v296, %v296
  %v320 = vmul.f32 %v298, %v298
  %v321 = vmul.f32 %v257, %v257
  %v322 = vmul.f32 %v259, %v259
  %v323 = vmul.f32 %v300, %v300
  %v324 = vmul.f32 %v302, %v302
  %v325 = vadd.f32 %v317, %v318
  %v326 = vadd.f32 %v325, %v319
  %v327 = vadd.f32 %v326, %v320
  %328 = vadd.xlane.f32.xlu0 %v327
  %v329 = vpop.xlane.xlu0 %328
  %v330 = vadd.f32 %v321, %v322
  %v331 = vadd.f32 %v330, %v323
  %v332 = vadd.f32 %v331, %v324
  %333 = vadd.xlane.f32.xlu0 %v332
  %v334 = vpop.xlane.xlu0 %333
  %v335 = vmul.f32 %v329, %v314
  %v336 = vmul.f32 %v334, %v314
  %v337 = vmul.f32 %v315, %v315
  %v338 = vmul.f32 %v316, %v316
  %v339 = vsub.f32 %v335, %v337
  %v340 = vsub.f32 %v336, %v338
  %v341 = vsub.f32 %v253, %v315
  %v342 = vsub.f32 %v255, %v315
  %v343 = vsub.f32 %v296, %v315
  %v344 = vsub.f32 %v298, %v315
  %v345 = vsub.f32 %v257, %v316
  %v346 = vsub.f32 %v259, %v316
  %v347 = vsub.f32 %v300, %v316
  %v348 = vsub.f32 %v302, %v316
  %v349 = vadd.f32 %v339, 1e-05
  %v350 = vadd.f32 %v340, 1e-05
  %v351 = vrsqrt.pop %v349
  %v352 = vrsqrt.pop %v350
  %v353 = vmul.f32 %v341, %v351
  %v354 = vmul.f32 %v342, %v351
  %v355 = vmul.f32 %v343, %v351
  %v356 = vmul.f32 %v344, %v351
  %v357 = vmul.f32 %v345, %v352
  %v358 = vmul.f32 %v346, %v352
  %v359 = vmul.f32 %v347, %v352
  %v360 = vmul.f32 %v348, %v352
  %v361 = vld [vmem:[%s2] sm:$0xff]
  %v362 = vld [vmem:[%s2 + $0x8] sm:$0xff]
  %364 = vset.pattern.permute.xlu0 0
  %365 = vperm.xlu0 %364, %v361
  %v366 = vpop.permute.xlu0 %365
  %369 = vset.pattern.permute.xlu0 0
  %370 = vperm.xlu0 %369, %v362
  %v371 = vpop.permute.xlu0 %370
  %v373 = vmul.f32 %v353, %v366
  %v374 = vmul.f32 %v354, %v366
  %v375 = vmul.f32 %v355, %v366
  %v376 = vmul.f32 %v356, %v366
  %v377 = vmul.f32 %v357, %v371
  %v378 = vmul.f32 %v358, %v371
  %v379 = vmul.f32 %v359, %v371
  %v380 = vmul.f32 %v360, %v371
  %v381 = vld [vmem:[%s3] sm:$0xff]
  %v382 = vld [vmem:[%s3 + $0x8] sm:$0xff]
  %384 = vset.pattern.permute.xlu0 0
  %385 = vperm.xlu0 %384, %v381
  %v386 = vpop.permute.xlu0 %385
  %389 = vset.pattern.permute.xlu0 0
  %390 = vperm.xlu0 %389, %v382
  %v391 = vpop.permute.xlu0 %390
  %v393 = vadd.f32 %v373, %v386
  %v394 = vadd.f32 %v374, %v386
  %v395 = vadd.f32 %v375, %v386
  %v396 = vadd.f32 %v376, %v386
  %v397 = vadd.f32 %v377, %v391
  %v398 = vadd.f32 %v378, %v391
  %v399 = vadd.f32 %v379, %v391
  %v400 = vadd.f32 %v380, %v391
  %vm401 = vcmp.gt.f32.partialorder %v393, 0.0
  %vm402 = vcmp.gt.f32.partialorder %v394, 0.0
  %vm403 = vcmp.gt.f32.partialorder %v395, 0.0
  %vm404 = vcmp.gt.f32.partialorder %v396, 0.0
  %vm405 = vcmp.gt.f32.partialorder %v397, 0.0
  %vm406 = vcmp.gt.f32.partialorder %v398, 0.0
  %vm407 = vcmp.gt.f32.partialorder %v399, 0.0
  %vm408 = vcmp.gt.f32.partialorder %v400, 0.0
  %v409 = vmul.f32 %v393, 0.2
  %v410 = vmul.f32 %v394, 0.2
  %v411 = vmul.f32 %v395, 0.2
  %v412 = vmul.f32 %v396, 0.2
  %v413 = vmul.f32 %v397, 0.2
  %v414 = vmul.f32 %v398, 0.2
  %v415 = vmul.f32 %v399, 0.2
  %v416 = vmul.f32 %v400, 0.2
  %v417 = vsel %vm401, %v393, %v409
  %v418 = vsel %vm402, %v394, %v410
  %v419 = vsel %vm403, %v395, %v411
  %v420 = vsel %vm404, %v396, %v412
  %v421 = vsel %vm405, %v397, %v413
  %v422 = vsel %vm406, %v398, %v414
  %v423 = vsel %vm407, %v399, %v415
  %v424 = vsel %vm408, %v400, %v416
  %v425 = vpack.c.bf16 %v421, %v417
  %v426 = vpack.c.bf16 %v422, %v418
  %v427 = vpack.c.bf16 %v423, %v419
  %v428 = vpack.c.bf16 %v424, %v420
  %v433 = vunpack.c.l.b16 %v425
  %v434 = vunpack.c.l.b16 %v426
  %v435 = vunpack.c.l.b16 %v427
  %v436 = vunpack.c.l.b16 %v428
  %v437 = vunpack.c.h.b16 %v425
  %v438 = vunpack.c.h.b16 %v426
  %v439 = vunpack.c.h.b16 %v427
  %v440 = vunpack.c.h.b16 %v428
  %v441 = vpack.c.b16 %v434, %v433
  %v442 = vpack.c.b16 %v436, %v435
  %v443 = vpack.c.b16 %v438, %v437
  %v444 = vpack.c.b16 %v440, %v439
  %449 = vst [vmem:[%s4] sm:$0xff] %v441
  %450 = vst [vmem:[%s4 + $0x8] sm:$0xff] %v442
  %451 = vst [vmem:[%s4 + $0x10] sm:$0xff] %v443
  %452 = vst [vmem:[%s4 + $0x18] sm:$0xff] %v444
  // Predicated region
  $region18: #{dcgan_d_forward.5} parent=0 // pred_check
    _
  $region19: #{dcgan_d_forward.5} parent=0 // pred_check_branch
    %454 = sbr.rel (0) target = $region21
  $region20: #{dcgan_d_forward.5} parent=0 // pred_region
    _
  $region21: #{dcgan_d_forward.5} parent=0 // pred_fallthru
    _
  // Predicated region
  $region22: #{dcgan_d_forward.5} parent=0 // pred_check
    _
  $region23: #{dcgan_d_forward.5} parent=0 // pred_check_branch
    %456 = sbr.rel (0) target = $region25
  $region24: #{dcgan_d_forward.5} parent=0 // pred_region
    _
  $region25: #{dcgan_d_forward.5} parent=0 // pred_fallthru
    _

// kernel: dcgan_d_forward.6
$region0: #{dcgan_d_forward.6}
  #allocation0 [shape = 'u32[]', space=smem, size = 0x4, offset = 0x4, fixed_abs, tag = 'smem constant byte address 0x4 - core index']
  #allocation1 [shape = 'u32[144,128]{1,0:T(1,128)}', space=vmem, size = 0x12000, scoped, tag = 'internal scratch']
  %s0 = inlined_call_operand.vmem [shape: bf16[32,256], index: 0, kind: input, shape index: {}]
  %s1 = inlined_call_operand.vmem [shape: bf16[256,128], index: 1, kind: input, shape index: {}]
  %s2 = inlined_call_operand.vmem [shape: f32[32,1], index: 2, kind: input, shape index: {}]
  %s3 = inlined_call_operand.vmem [shape: f32[32,1], index: 3, kind: input, shape index: {}]
  %s4 = inlined_call_operand.vmem [shape: bf16[32,128], index: 4, kind: output, shape index: {}]
  %s5 = sld [smem:[#allocation0]]
  $region26: #{dcgan_d_forward.6} parent=0
    _
  %s7 = ssub.s32 1, %s5
  %s8 = scalar_select 0, %s7, %s5
  // Predicated region
  $region2: #{dcgan_d_forward.6} parent=0 // pred_check
    _
  $region3: #{dcgan_d_forward.6} parent=0 // pred_check_branch
    %10 = sbr.rel (0) target = $region5
  $region4: #{dcgan_d_forward.6} parent=0 // pred_region
    _
  $region5: #{dcgan_d_forward.6} parent=0 // pred_fallthru
    _
  // Predicated region
  $region6: #{dcgan_d_forward.6} parent=0 // pred_check
    _
  $region7: #{dcgan_d_forward.6} parent=0 // pred_check_branch
    %12 = sbr.rel (0) target = $region9
  $region8: #{dcgan_d_forward.6} parent=0 // pred_region
    _
  $region9: #{dcgan_d_forward.6} parent=0 // pred_fallthru
    _
  // Predicated region
  $region10: #{dcgan_d_forward.6} parent=0 // pred_check
    _
  $region11: #{dcgan_d_forward.6} parent=0 // pred_check_branch
    %14 = sbr.rel (0) target = $region13
  $region12: #{dcgan_d_forward.6} parent=0 // pred_region
    _
  $region13: #{dcgan_d_forward.6} parent=0 // pred_fallthru
    _
  // Predicated region
  $region14: #{dcgan_d_forward.6} parent=0 // pred_check
    _
  $region15: #{dcgan_d_forward.6} parent=0 // pred_check_branch
    %16 = sbr.rel (0) target = $region17
  $region16: #{dcgan_d_forward.6} parent=0 // pred_region
    _
  $region17: #{dcgan_d_forward.6} parent=0 // pred_fallthru
    _
  %v18 = vld [vmem:[%s0] sm:$0xff]
  %v19 = vld [vmem:[%s0 + $0x8] sm:$0xff]
  %v20 = vld [vmem:[%s0 + $0x10] sm:$0xff]
  %v21 = vld [vmem:[%s0 + $0x18] sm:$0xff]
  %v22 = vld [vmem:[%s1] sm:$0xf]
  %v23 = vld [vmem:[%s1 + $0x4] sm:$0xf]
  %v24 = vld [vmem:[%s1 + $0x8] sm:$0xf]
  %v25 = vld [vmem:[%s1 + $0xc] sm:$0xf]
  %v26 = vld [vmem:[%s1 + $0x10] sm:$0xf]
  %v27 = vld [vmem:[%s1 + $0x14] sm:$0xf]
  %v28 = vld [vmem:[%s1 + $0x18] sm:$0xf]
  %v29 = vld [vmem:[%s1 + $0x1c] sm:$0xf]
  %v30 = vld [vmem:[%s1 + $0x20] sm:$0xf]
  %v31 = vld [vmem:[%s1 + $0x24] sm:$0xf]
  %v32 = vld [vmem:[%s1 + $0x28] sm:$0xf]
  %v33 = vld [vmem:[%s1 + $0x2c] sm:$0xf]
  %v34 = vld [vmem:[%s1 + $0x30] sm:$0xf]
  %v35 = vld [vmem:[%s1 + $0x34] sm:$0xf]
  %v36 = vld [vmem:[%s1 + $0x38] sm:$0xf]
  %v37 = vld [vmem:[%s1 + $0x3c] sm:$0xf]
  %v38 = vld [vmem:[%s1 + $0x40] sm:$0xf]
  %v39 = vld [vmem:[%s1 + $0x44] sm:$0xf]
  %v40 = vld [vmem:[%s1 + $0x48] sm:$0xf]
  %v41 = vld [vmem:[%s1 + $0x4c] sm:$0xf]
  %v42 = vld [vmem:[%s1 + $0x50] sm:$0xf]
  %v43 = vld [vmem:[%s1 + $0x54] sm:$0xf]
  %v44 = vld [vmem:[%s1 + $0x58] sm:$0xf]
  %v45 = vld [vmem:[%s1 + $0x5c] sm:$0xf]
  %v46 = vld [vmem:[%s1 + $0x60] sm:$0xf]
  %v47 = vld [vmem:[%s1 + $0x64] sm:$0xf]
  %v48 = vld [vmem:[%s1 + $0x68] sm:$0xf]
  %v49 = vld [vmem:[%s1 + $0x6c] sm:$0xf]
  %v50 = vld [vmem:[%s1 + $0x70] sm:$0xf]
  %v51 = vld [vmem:[%s1 + $0x74] sm:$0xf]
  %v52 = vld [vmem:[%s1 + $0x78] sm:$0xf]
  %v53 = vld [vmem:[%s1 + $0x7c] sm:$0xf]
  %v58 = vunpack.c.l.b16 %v18
  %v59 = vunpack.c.h.b16 %v18
  %v60 = vunpack.c.l.b16 %v19
  %v61 = vunpack.c.h.b16 %v19
  %v62 = vunpack.c.l.b16 %v20
  %v63 = vunpack.c.h.b16 %v20
  %v64 = vunpack.c.l.b16 %v21
  %v65 = vunpack.c.h.b16 %v21
  %v66 = vpack.c.b16 %v60, %v58
  %v67 = vpack.c.b16 %v61, %v59
  %v68 = vpack.c.b16 %v64, %v62
  %v69 = vpack.c.b16 %v65, %v63
  %v106 = vunpack.c.l.b16 %v22
  %v107 = vunpack.c.l.b16 %v23
  %v108 = vunpack.c.l.b16 %v24
  %v109 = vunpack.c.l.b16 %v25
  %v110 = vunpack.c.l.b16 %v26
  %v111 = vunpack.c.l.b16 %v27
  %v112 = vunpack.c.l.b16 %v28
  %v113 = vunpack.c.l.b16 %v29
  %v114 = vunpack.c.l.b16 %v30
  %v115 = vunpack.c.l.b16 %v31
  %v116 = vunpack.c.l.b16 %v32
  %v117 = vunpack.c.l.b16 %v33
  %v118 = vunpack.c.l.b16 %v34
  %v119 = vunpack.c.l.b16 %v35
  %v120 = vunpack.c.l.b16 %v36
  %v121 = vunpack.c.l.b16 %v37
  %v122 = vunpack.c.l.b16 %v38
  %v123 = vunpack.c.l.b16 %v39
  %v124 = vunpack.c.l.b16 %v40
  %v125 = vunpack.c.l.b16 %v41
  %v126 = vunpack.c.l.b16 %v42
  %v127 = vunpack.c.l.b16 %v43
  %v128 = vunpack.c.l.b16 %v44
  %v129 = vunpack.c.l.b16 %v45
  %v130 = vunpack.c.l.b16 %v46
  %v131 = vunpack.c.l.b16 %v47
  %v132 = vunpack.c.l.b16 %v48
  %v133 = vunpack.c.l.b16 %v49
  %v134 = vunpack.c.l.b16 %v50
  %v135 = vunpack.c.l.b16 %v51
  %v136 = vunpack.c.l.b16 %v52
  %v137 = vunpack.c.l.b16 %v53
  %v138 = vpack.c.b16 %v107, %v106
  %v139 = vpack.c.b16 %v109, %v108
  %v140 = vpack.c.b16 %v111, %v110
  %v141 = vpack.c.b16 %v113, %v112
  %v142 = vpack.c.b16 %v115, %v114
  %v143 = vpack.c.b16 %v117, %v116
  %v144 = vpack.c.b16 %v119, %v118
  %v145 = vpack.c.b16 %v121, %v120
  %v146 = vpack.c.b16 %v123, %v122
  %v147 = vpack.c.b16 %v125, %v124
  %v148 = vpack.c.b16 %v127, %v126
  %v149 = vpack.c.b16 %v129, %v128
  %v150 = vpack.c.b16 %v131, %v130
  %v151 = vpack.c.b16 %v133, %v132
  %v152 = vpack.c.b16 %v135, %v134
  %v153 = vpack.c.b16 %v137, %v136
  %170 = vmatprep.subr.bf16.mxu0 0
  %171 = vmatpush1.bf16.msra.mxu0 %v145
  %172 = vmatprep.subr.bf16.mxu0 0
  %173 = vmatpush1.bf16.msra.mxu0 %v144
  %174 = vmatprep.subr.bf16.mxu0 0
  %175 = vmatpush1.bf16.msra.mxu0 %v143
  %176 = vmatprep.subr.bf16.mxu0 0
  %177 = vmatpush1.bf16.msra.mxu0 %v142
  %178 = vmatprep.subr.bf16.mxu0 0
  %179 = vmatpush1.bf16.msra.mxu0 %v141
  %180 = vmatprep.subr.bf16.mxu0 0
  %181 = vmatpush1.bf16.msra.mxu0 %v140
  %182 = vmatprep.subr.bf16.mxu0 0
  %183 = vmatpush1.bf16.msra.mxu0 %v139
  %184 = vmatprep.subr.bf16.mxu0 0
  %185 = vmatpush1.bf16.msra.mxu0 %v138
  %186 = vmatprep.subr.bf16.mxu0 0
  %187 = vmatpush2.bf16.msra.mxu0 %v153
  %188 = vmatprep.subr.bf16.mxu0 0
  %189 = vmatpush2.bf16.msra.mxu0 %v152
  %190 = vmatprep.subr.bf16.mxu0 0
  %191 = vmatpush2.bf16.msra.mxu0 %v151
  %192 = vmatprep.subr.bf16.mxu0 0
  %193 = vmatpush2.bf16.msra.mxu0 %v150
  %194 = vmatprep.subr.bf16.mxu0 0
  %195 = vmatpush2.bf16.msra.mxu0 %v149
  %196 = vmatprep.subr.bf16.mxu0 0
  %197 = vmatpush2.bf16.msra.mxu0 %v148
  %198 = vmatprep.subr.bf16.mxu0 0
  %199 = vmatpush2.bf16.msra.mxu0 %v147
  %200 = vmatprep.subr.bf16.mxu0 0
  %201 = vmatpush2.bf16.msra.mxu0 %v146
  %202 = vmatprep.mubr.bf16.mxu0 %v67
  %203 = vmatmul.mubr.bf16.gmra.mxu0 %v66
  %v204 = vpop.f32.mrf.mxu0
  %v205 = vadd.f32 0.0, %v204
  %v206 = vpop.f32.mrf.mxu0
  %v207 = vpop.f32.mrf.mxu0
  %v208 = vadd.f32 0.0, %v207
  %v209 = vpop.f32.mrf.mxu0
  %210 = vmatprep.mubr.bf16.mxu0 %v69
  %211 = vmatmul.mubr.bf16.gmra.mxu0 %v68
  %v212 = vpop.f32.mrf.mxu0
  %v213 = vadd.f32 0.0, %v212
  %v214 = vpop.f32.mrf.mxu0
  %v215 = vpop.f32.mrf.mxu0
  %v216 = vadd.f32 0.0, %v215
  %v217 = vpop.f32.mrf.mxu0
  %218 = vdwg.mxu0
  %219 = vadd.xlane.f32.xlu0 %v205
  %v220 = vpop.xlane.xlu0 %219
  %221 = vadd.xlane.f32.xlu0 %v208
  %v222 = vpop.xlane.xlu0 %221
  %223 = vadd.xlane.f32.xlu0 %v213
  %v224 = vpop.xlane.xlu0 %223
  %225 = vadd.xlane.f32.xlu0 %v216
  %v226 = vpop.xlane.xlu0 %225
  %v227 = vrcp.pop 128.0
  %v228 = vmul.f32 %v220, %v227
  %v229 = vmul.f32 %v222, %v227
  %v230 = vmul.f32 %v224, %v227
  %v231 = vmul.f32 %v226, %v227
  %v232 = vmul.f32 %v205, %v205
  %v233 = vmul.f32 %v208, %v208
  %v234 = vmul.f32 %v213, %v213
  %v235 = vmul.f32 %v216, %v216
  %236 = vadd.xlane.f32.xlu0 %v232
  %v237 = vpop.xlane.xlu0 %236
  %238 = vadd.xlane.f32.xlu0 %v233
  %v239 = vpop.xlane.xlu0 %238
  %240 = vadd.xlane.f32.xlu0 %v234
  %v241 = vpop.xlane.xlu0 %240
  %242 = vadd.xlane.f32.xlu0 %v235
  %v243 = vpop.xlane.xlu0 %242
  %v244 = vmul.f32 %v237, %v227
  %v245 = vmul.f32 %v239, %v227
  %v246 = vmul.f32 %v241, %v227
  %v247 = vmul.f32 %v243, %v227
  %v248 = vmul.f32 %v228, %v228
  %v249 = vmul.f32 %v229, %v229
  %v250 = vmul.f32 %v230, %v230
  %v251 = vmul.f32 %v231, %v231
  %v252 = vsub.f32 %v244, %v248
  %v253 = vsub.f32 %v245, %v249
  %v254 = vsub.f32 %v246, %v250
  %v255 = vsub.f32 %v247, %v251
  %v256 = vsub.f32 %v205, %v228
  %v257 = vsub.f32 %v208, %v229
  %v258 = vsub.f32 %v213, %v230
  %v259 = vsub.f32 %v216, %v231
  %v260 = vadd.f32 %v252, 1e-05
  %v261 = vadd.f32 %v253, 1e-05
  %v262 = vadd.f32 %v254, 1e-05
  %v263 = vadd.f32 %v255, 1e-05
  %v264 = vrsqrt.pop %v260
  %v265 = vrsqrt.pop %v261
  %v266 = vrsqrt.pop %v262
  %v267 = vrsqrt.pop %v263
  %v268 = vmul.f32 %v256, %v264
  %v269 = vmul.f32 %v257, %v265
  %v270 = vmul.f32 %v258, %v266
  %v271 = vmul.f32 %v259, %v267
  %v272 = vld [vmem:[%s2] sm:$0xff]
  %v273 = vld [vmem:[%s2 + $0x8] sm:$0xff]
  %v274 = vld [vmem:[%s2 + $0x10] sm:$0xff]
  %v275 = vld [vmem:[%s2 + $0x18] sm:$0xff]
  %277 = vset.pattern.permute.xlu0 0
  %278 = vperm.xlu0 %277, %v272
  %v279 = vpop.permute.xlu0 %278
  %282 = vset.pattern.permute.xlu0 0
  %283 = vperm.xlu0 %282, %v273
  %v284 = vpop.permute.xlu0 %283
  %287 = vset.pattern.permute.xlu0 0
  %288 = vperm.xlu0 %287, %v274
  %v289 = vpop.permute.xlu0 %288
  %292 = vset.pattern.permute.xlu0 0
  %293 = vperm.xlu0 %292, %v275
  %v294 = vpop.permute.xlu0 %293
  %v296 = vmul.f32 %v268, %v279
  %v297 = vmul.f32 %v269, %v284
  %v298 = vmul.f32 %v270, %v289
  %v299 = vmul.f32 %v271, %v294
  %v300 = vld [vmem:[%s3] sm:$0xff]
  %v301 = vld [vmem:[%s3 + $0x8] sm:$0xff]
  %v302 = vld [vmem:[%s3 + $0x10] sm:$0xff]
  %v303 = vld [vmem:[%s3 + $0x18] sm:$0xff]
  %305 = vset.pattern.permute.xlu0 0
  %306 = vperm.xlu0 %305, %v300
  %v307 = vpop.permute.xlu0 %306
  %310 = vset.pattern.permute.xlu0 0
  %311 = vperm.xlu0 %310, %v301
  %v312 = vpop.permute.xlu0 %311
  %315 = vset.pattern.permute.xlu0 0
  %316 = vperm.xlu0 %315, %v302
  %v317 = vpop.permute.xlu0 %316
  %320 = vset.pattern.permute.xlu0 0
  %321 = vperm.xlu0 %320, %v303
  %v322 = vpop.permute.xlu0 %321
  %v324 = vadd.f32 %v296, %v307
  %v325 = vadd.f32 %v297, %v312
  %v326 = vadd.f32 %v298, %v317
  %v327 = vadd.f32 %v299, %v322
  %vm328 = vcmp.gt.f32.partialorder %v324, 0.0
  %vm329 = vcmp.gt.f32.partialorder %v325, 0.0
  %vm330 = vcmp.gt.f32.partialorder %v326, 0.0
  %vm331 = vcmp.gt.f32.partialorder %v327, 0.0
  %v332 = vmul.f32 %v324, 0.2
  %v333 = vmul.f32 %v325, 0.2
  %v334 = vmul.f32 %v326, 0.2
  %v335 = vmul.f32 %v327, 0.2
  %v336 = vsel %vm328, %v324, %v332
  %v337 = vsel %vm329, %v325, %v333
  %v338 = vsel %vm330, %v326, %v334
  %v339 = vsel %vm331, %v327, %v335
  %v340 = vpack.c.bf16 %v337, %v336
  %v341 = vpack.c.bf16 %v339, %v338
  %v344 = vunpack.c.l.b16 %v340
  %v345 = vunpack.c.h.b16 %v340
  %v346 = vunpack.c.l.b16 %v341
  %v347 = vunpack.c.h.b16 %v341
  %v348 = vpack.c.b16 %v344, %v344
  %v349 = vpack.c.b16 %v345, %v345
  %v350 = vpack.c.b16 %v346, %v346
  %v351 = vpack.c.b16 %v347, %v347
  %356 = vst [vmem:[%s4] sm:$0xf] %v348
  %357 = vst [vmem:[%s4 + $0x4] sm:$0xf] %v349
  %358 = vst [vmem:[%s4 + $0x8] sm:$0xf] %v350
  %359 = vst [vmem:[%s4 + $0xc] sm:$0xf] %v351
  // Predicated region
  $region18: #{dcgan_d_forward.6} parent=0 // pred_check
    _
  $region19: #{dcgan_d_forward.6} parent=0 // pred_check_branch
    %361 = sbr.rel (0) target = $region21
  $region20: #{dcgan_d_forward.6} parent=0 // pred_region
    _
  $region21: #{dcgan_d_forward.6} parent=0 // pred_fallthru
    _
  // Predicated region
  $region22: #{dcgan_d_forward.6} parent=0 // pred_check
    _
  $region23: #{dcgan_d_forward.6} parent=0 // pred_check_branch
    %363 = sbr.rel (0) target = $region25
  $region24: #{dcgan_d_forward.6} parent=0 // pred_region
    _
  $region25: #{dcgan_d_forward.6} parent=0 // pred_fallthru
    _

// kernel: dcgan_d_forward.7
$region0: #{dcgan_d_forward.7}
  #allocation0 [shape = 'u32[]', space=smem, size = 0x4, offset = 0x4, fixed_abs, tag = 'smem constant byte address 0x4 - core index']
  #allocation1 [shape = 'u32[144,128]{1,0:T(1,128)}', space=vmem, size = 0x12000, scoped, tag = 'internal scratch']
  %s0 = inlined_call_operand.vmem [shape: bf16[64,512], index: 0, kind: input, shape index: {}]
  %s1 = inlined_call_operand.vmem [shape: bf16[512,32], index: 1, kind: input, shape index: {}]
  %s2 = inlined_call_operand.vmem [shape: f32[64,1], index: 2, kind: input, shape index: {}]
  %s3 = inlined_call_operand.vmem [shape: f32[64,1], index: 3, kind: input, shape index: {}]
  %s4 = inlined_call_operand.vmem [shape: f32[64,32], index: 4, kind: input, shape index: {}]
  %s5 = inlined_call_operand.vmem [shape: f32[32,2], index: 5, kind: input, shape index: {}]
  %s6 = inlined_call_operand.vmem [shape: f32[4,1], index: 6, kind: input, shape index: {}]
  %s7 = inlined_call_operand.vmem [shape: f32[4,2], index: 7, kind: input, shape index: {}]
  %s8 = inlined_call_operand.hbm [shape: f32[1,2], index: 8, kind: output, shape index: {}]
  %s9 = sld [smem:[#allocation0]]
  $region42: #{dcgan_d_forward.7} parent=0
    _
  %s11 = ssub.s32 1, %s9
  %s12 = scalar_select 0, %s11, %s9
  $region1: #{dcgan_d_forward.7} parent=0
    #allocation2 [shape = 'u8[512]{0}', space=vmem, size = 0x400, scoped, tag = 'output window, operand 0, single buffered']
    #allocation3 [shape = 's32[1]{0}', space=sflag, size = 0x4, scoped, tag = 'scoped memory for dcgan_d_forward.7']
    %13 = vsyncpa [#allocation3], 0
    // Predicated region
    $region2: #{dcgan_d_forward.7} parent=1 // pred_check
      _
    $region3: #{dcgan_d_forward.7} parent=1 // pred_check_branch
      %15 = sbr.rel (0) target = $region5
    $region4: #{dcgan_d_forward.7} parent=1 // pred_region
      _
    $region5: #{dcgan_d_forward.7} parent=1 // pred_fallthru
      _
    // Predicated region
    $region6: #{dcgan_d_forward.7} parent=1 // pred_check
      _
    $region7: #{dcgan_d_forward.7} parent=1 // pred_check_branch
      %17 = sbr.rel (0) target = $region9
    $region8: #{dcgan_d_forward.7} parent=1 // pred_region
      _
    $region9: #{dcgan_d_forward.7} parent=1 // pred_fallthru
      _
    // Predicated region
    $region10: #{dcgan_d_forward.7} parent=1 // pred_check
      _
    $region11: #{dcgan_d_forward.7} parent=1 // pred_check_branch
      %19 = sbr.rel (0) target = $region13
    $region12: #{dcgan_d_forward.7} parent=1 // pred_region
      _
    $region13: #{dcgan_d_forward.7} parent=1 // pred_fallthru
      _
    // Predicated region
    $region14: #{dcgan_d_forward.7} parent=1 // pred_check
      _
    $region15: #{dcgan_d_forward.7} parent=1 // pred_check_branch
      %21 = sbr.rel (0) target = $region17
    $region16: #{dcgan_d_forward.7} parent=1 // pred_region
      _
    $region17: #{dcgan_d_forward.7} parent=1 // pred_fallthru
      _
    // Predicated region
    $region18: #{dcgan_d_forward.7} parent=1 // pred_check
      _
    $region19: #{dcgan_d_forward.7} parent=1 // pred_check_branch
      %23 = sbr.rel (0) target = $region21
    $region20: #{dcgan_d_forward.7} parent=1 // pred_region
      _
    $region21: #{dcgan_d_forward.7} parent=1 // pred_fallthru
      _
    // Predicated region
    $region22: #{dcgan_d_forward.7} parent=1 // pred_check
      _
    $region23: #{dcgan_d_forward.7} parent=1 // pred_check_branch
      %25 = sbr.rel (0) target = $region25
    $region24: #{dcgan_d_forward.7} parent=1 // pred_region
      _
    $region25: #{dcgan_d_forward.7} parent=1 // pred_fallthru
      _
    // Predicated region
    $region26: #{dcgan_d_forward.7} parent=1 // pred_check
      _
    $region27: #{dcgan_d_forward.7} parent=1 // pred_check_branch
      %27 = sbr.rel (0) target = $region29
    $region28: #{dcgan_d_forward.7} parent=1 // pred_region
      _
    $region29: #{dcgan_d_forward.7} parent=1 // pred_fallthru
      _
    // Predicated region
    $region30: #{dcgan_d_forward.7} parent=1 // pred_check
      _
    $region31: #{dcgan_d_forward.7} parent=1 // pred_check_branch
      %29 = sbr.rel (0) target = $region33
    $region32: #{dcgan_d_forward.7} parent=1 // pred_region
      _
    $region33: #{dcgan_d_forward.7} parent=1 // pred_fallthru
      _
    %v31 = vld [vmem:[%s0] sm:$0xff]
    %v32 = vld [vmem:[%s0 + $0x8] sm:$0xff]
    %v33 = vld [vmem:[%s0 + $0x10] sm:$0xff]
    %v34 = vld [vmem:[%s0 + $0x18] sm:$0xff]
    %v35 = vld [vmem:[%s0 + $0x20] sm:$0xff]
    %v36 = vld [vmem:[%s0 + $0x28] sm:$0xff]
    %v37 = vld [vmem:[%s0 + $0x30] sm:$0xff]
    %v38 = vld [vmem:[%s0 + $0x38] sm:$0xff]
    %v39 = vld [vmem:[%s0 + $0x40] sm:$0xff]
    %v40 = vld [vmem:[%s0 + $0x48] sm:$0xff]
    %v41 = vld [vmem:[%s0 + $0x50] sm:$0xff]
    %v42 = vld [vmem:[%s0 + $0x58] sm:$0xff]
    %v43 = vld [vmem:[%s0 + $0x60] sm:$0xff]
    %v44 = vld [vmem:[%s0 + $0x68] sm:$0xff]
    %v45 = vld [vmem:[%s0 + $0x70] sm:$0xff]
    %v46 = vld [vmem:[%s0 + $0x78] sm:$0xff]
    %v47 = vld [vmem:[%s1] sm:$0xf]
    %v48 = vld [vmem:[%s1 + $0x4] sm:$0xf]
    %v49 = vld [vmem:[%s1 + $0x8] sm:$0xf]
    %v50 = vld [vmem:[%s1 + $0xc] sm:$0xf]
    %v51 = vld [vmem:[%s1 + $0x10] sm:$0xf]
    %v52 = vld [vmem:[%s1 + $0x14] sm:$0xf]
    %v53 = vld [vmem:[%s1 + $0x18] sm:$0xf]
    %v54 = vld [vmem:[%s1 + $0x1c] sm:$0xf]
    %v55 = vld [vmem:[%s1 + $0x20] sm:$0xf]
    %v56 = vld [vmem:[%s1 + $0x24] sm:$0xf]
    %v57 = vld [vmem:[%s1 + $0x28] sm:$0xf]
    %v58 = vld [vmem:[%s1 + $0x2c] sm:$0xf]
    %v59 = vld [vmem:[%s1 + $0x30] sm:$0xf]
    %v60 = vld [vmem:[%s1 + $0x34] sm:$0xf]
    %v61 = vld [vmem:[%s1 + $0x38] sm:$0xf]
    %v62 = vld [vmem:[%s1 + $0x3c] sm:$0xf]
    %v63 = vld [vmem:[%s1 + $0x40] sm:$0xf]
    %v64 = vld [vmem:[%s1 + $0x44] sm:$0xf]
    %v65 = vld [vmem:[%s1 + $0x48] sm:$0xf]
    %v66 = vld [vmem:[%s1 + $0x4c] sm:$0xf]
    %v67 = vld [vmem:[%s1 + $0x50] sm:$0xf]
    %v68 = vld [vmem:[%s1 + $0x54] sm:$0xf]
    %v69 = vld [vmem:[%s1 + $0x58] sm:$0xf]
    %v70 = vld [vmem:[%s1 + $0x5c] sm:$0xf]
    %v71 = vld [vmem:[%s1 + $0x60] sm:$0xf]
    %v72 = vld [vmem:[%s1 + $0x64] sm:$0xf]
    %v73 = vld [vmem:[%s1 + $0x68] sm:$0xf]
    %v74 = vld [vmem:[%s1 + $0x6c] sm:$0xf]
    %v75 = vld [vmem:[%s1 + $0x70] sm:$0xf]
    %v76 = vld [vmem:[%s1 + $0x74] sm:$0xf]
    %v77 = vld [vmem:[%s1 + $0x78] sm:$0xf]
    %v78 = vld [vmem:[%s1 + $0x7c] sm:$0xf]
    %v79 = vld [vmem:[%s1 + $0x80] sm:$0xf]
    %v80 = vld [vmem:[%s1 + $0x84] sm:$0xf]
    %v81 = vld [vmem:[%s1 + $0x88] sm:$0xf]
    %v82 = vld [vmem:[%s1 + $0x8c] sm:$0xf]
    %v83 = vld [vmem:[%s1 + $0x90] sm:$0xf]
    %v84 = vld [vmem:[%s1 + $0x94] sm:$0xf]
    %v85 = vld [vmem:[%s1 + $0x98] sm:$0xf]
    %v86 = vld [vmem:[%s1 + $0x9c] sm:$0xf]
    %v87 = vld [vmem:[%s1 + $0xa0] sm:$0xf]
    %v88 = vld [vmem:[%s1 + $0xa4] sm:$0xf]
    %v89 = vld [vmem:[%s1 + $0xa8] sm:$0xf]
    %v90 = vld [vmem:[%s1 + $0xac] sm:$0xf]
    %v91 = vld [vmem:[%s1 + $0xb0] sm:$0xf]
    %v92 = vld [vmem:[%s1 + $0xb4] sm:$0xf]
    %v93 = vld [vmem:[%s1 + $0xb8] sm:$0xf]
    %v94 = vld [vmem:[%s1 + $0xbc] sm:$0xf]
    %v95 = vld [vmem:[%s1 + $0xc0] sm:$0xf]
    %v96 = vld [vmem:[%s1 + $0xc4] sm:$0xf]
    %v97 = vld [vmem:[%s1 + $0xc8] sm:$0xf]
    %v98 = vld [vmem:[%s1 + $0xcc] sm:$0xf]
    %v99 = vld [vmem:[%s1 + $0xd0] sm:$0xf]
    %v100 = vld [vmem:[%s1 + $0xd4] sm:$0xf]
    %v101 = vld [vmem:[%s1 + $0xd8] sm:$0xf]
    %v102 = vld [vmem:[%s1 + $0xdc] sm:$0xf]
    %v103 = vld [vmem:[%s1 + $0xe0] sm:$0xf]
    %v104 = vld [vmem:[%s1 + $0xe4] sm:$0xf]
    %v105 = vld [vmem:[%s1 + $0xe8] sm:$0xf]
    %v106 = vld [vmem:[%s1 + $0xec] sm:$0xf]
    %v107 = vld [vmem:[%s1 + $0xf0] sm:$0xf]
    %v108 = vld [vmem:[%s1 + $0xf4] sm:$0xf]
    %v109 = vld [vmem:[%s1 + $0xf8] sm:$0xf]
    %v110 = vld [vmem:[%s1 + $0xfc] sm:$0xf]
    %v127 = vunpack.c.l.b16 %v31
    %v128 = vunpack.c.h.b16 %v31
    %v129 = vunpack.c.l.b16 %v32
    %v130 = vunpack.c.h.b16 %v32
    %v131 = vunpack.c.l.b16 %v33
    %v132 = vunpack.c.h.b16 %v33
    %v133 = vunpack.c.l.b16 %v34
    %v134 = vunpack.c.h.b16 %v34
    %v135 = vunpack.c.l.b16 %v35
    %v136 = vunpack.c.h.b16 %v35
    %v137 = vunpack.c.l.b16 %v36
    %v138 = vunpack.c.h.b16 %v36
    %v139 = vunpack.c.l.b16 %v37
    %v140 = vunpack.c.h.b16 %v37
    %v141 = vunpack.c.l.b16 %v38
    %v142 = vunpack.c.h.b16 %v38
    %v143 = vunpack.c.l.b16 %v39
    %v144 = vunpack.c.h.b16 %v39
    %v145 = vunpack.c.l.b16 %v40
    %v146 = vunpack.c.h.b16 %v40
    %v147 = vunpack.c.l.b16 %v41
    %v148 = vunpack.c.h.b16 %v41
    %v149 = vunpack.c.l.b16 %v42
    %v150 = vunpack.c.h.b16 %v42
    %v151 = vunpack.c.l.b16 %v43
    %v152 = vunpack.c.h.b16 %v43
    %v153 = vunpack.c.l.b16 %v44
    %v154 = vunpack.c.h.b16 %v44
    %v155 = vunpack.c.l.b16 %v45
    %v156 = vunpack.c.h.b16 %v45
    %v157 = vunpack.c.l.b16 %v46
    %v158 = vunpack.c.h.b16 %v46
    %v159 = vpack.c.b16 %v131, %v127
    %v160 = vpack.c.b16 %v132, %v128
    %v161 = vpack.c.b16 %v133, %v129
    %v162 = vpack.c.b16 %v134, %v130
    %v163 = vpack.c.b16 %v139, %v135
    %v164 = vpack.c.b16 %v140, %v136
    %v165 = vpack.c.b16 %v141, %v137
    %v166 = vpack.c.b16 %v142, %v138
    %v167 = vpack.c.b16 %v147, %v143
    %v168 = vpack.c.b16 %v148, %v144
    %v169 = vpack.c.b16 %v149, %v145
    %v170 = vpack.c.b16 %v150, %v146
    %v171 = vpack.c.b16 %v155, %v151
    %v172 = vpack.c.b16 %v156, %v152
    %v173 = vpack.c.b16 %v157, %v153
    %v174 = vpack.c.b16 %v158, %v154
    %v255 = vunpack.c.l.b16 %v47
    %v256 = vunpack.c.l.b16 %v48
    %v257 = vunpack.c.l.b16 %v49
    %v258 = vunpack.c.l.b16 %v50
    %v259 = vunpack.c.l.b16 %v51
    %v260 = vunpack.c.l.b16 %v52
    %v261 = vunpack.c.l.b16 %v53
    %v262 = vunpack.c.l.b16 %v54
    %v263 = vunpack.c.l.b16 %v55
    %v264 = vunpack.c.l.b16 %v56
    %v265 = vunpack.c.l.b16 %v57
    %v266 = vunpack.c.l.b16 %v58
    %v267 = vunpack.c.l.b16 %v59
    %v268 = vunpack.c.l.b16 %v60
    %v269 = vunpack.c.l.b16 %v61
    %v270 = vunpack.c.l.b16 %v62
    %v271 = vunpack.c.l.b16 %v63
    %v272 = vunpack.c.l.b16 %v64
    %v273 = vunpack.c.l.b16 %v65
    %v274 = vunpack.c.l.b16 %v66
    %v275 = vunpack.c.l.b16 %v67
    %v276 = vunpack.c.l.b16 %v68
    %v277 = vunpack.c.l.b16 %v69
    %v278 = vunpack.c.l.b16 %v70
    %v279 = vunpack.c.l.b16 %v71
    %v280 = vunpack.c.l.b16 %v72
    %v281 = vunpack.c.l.b16 %v73
    %v282 = vunpack.c.l.b16 %v74
    %v283 = vunpack.c.l.b16 %v75
    %v284 = vunpack.c.l.b16 %v76
    %v285 = vunpack.c.l.b16 %v77
    %v286 = vunpack.c.l.b16 %v78
    %v287 = vunpack.c.l.b16 %v79
    %v288 = vunpack.c.l.b16 %v80
    %v289 = vunpack.c.l.b16 %v81
    %v290 = vunpack.c.l.b16 %v82
    %v291 = vunpack.c.l.b16 %v83
    %v292 = vunpack.c.l.b16 %v84
    %v293 = vunpack.c.l.b16 %v85
    %v294 = vunpack.c.l.b16 %v86
    %v295 = vunpack.c.l.b16 %v87
    %v296 = vunpack.c.l.b16 %v88
    %v297 = vunpack.c.l.b16 %v89
    %v298 = vunpack.c.l.b16 %v90
    %v299 = vunpack.c.l.b16 %v91
    %v300 = vunpack.c.l.b16 %v92
    %v301 = vunpack.c.l.b16 %v93
    %v302 = vunpack.c.l.b16 %v94
    %v303 = vunpack.c.l.b16 %v95
    %v304 = vunpack.c.l.b16 %v96
    %v305 = vunpack.c.l.b16 %v97
    %v306 = vunpack.c.l.b16 %v98
    %v307 = vunpack.c.l.b16 %v99
    %v308 = vunpack.c.l.b16 %v100
    %v309 = vunpack.c.l.b16 %v101
    %v310 = vunpack.c.l.b16 %v102
    %v311 = vunpack.c.l.b16 %v103
    %v312 = vunpack.c.l.b16 %v104
    %v313 = vunpack.c.l.b16 %v105
    %v314 = vunpack.c.l.b16 %v106
    %v315 = vunpack.c.l.b16 %v107
    %v316 = vunpack.c.l.b16 %v108
    %v317 = vunpack.c.l.b16 %v109
    %v318 = vunpack.c.l.b16 %v110
    %v319 = vpack.c.b16 %v256, %v255
    %v320 = vpack.c.b16 %v258, %v257
    %v321 = vpack.c.b16 %v260, %v259
    %v322 = vpack.c.b16 %v262, %v261
    %v323 = vpack.c.b16 %v264, %v263
    %v324 = vpack.c.b16 %v266, %v265
    %v325 = vpack.c.b16 %v268, %v267
    %v326 = vpack.c.b16 %v270, %v269
    %v327 = vpack.c.b16 %v272, %v271
    %v328 = vpack.c.b16 %v274, %v273
    %v329 = vpack.c.b16 %v276, %v275
    %v330 = vpack.c.b16 %v278, %v277
    %v331 = vpack.c.b16 %v280, %v279
    %v332 = vpack.c.b16 %v282, %v281
    %v333 = vpack.c.b16 %v284, %v283
    %v334 = vpack.c.b16 %v286, %v285
    %v335 = vpack.c.b16 %v288, %v287
    %v336 = vpack.c.b16 %v290, %v289
    %v337 = vpack.c.b16 %v292, %v291
    %v338 = vpack.c.b16 %v294, %v293
    %v339 = vpack.c.b16 %v296, %v295
    %v340 = vpack.c.b16 %v298, %v297
    %v341 = vpack.c.b16 %v300, %v299
    %v342 = vpack.c.b16 %v302, %v301
    %v343 = vpack.c.b16 %v304, %v303
    %v344 = vpack.c.b16 %v306, %v305
    %v345 = vpack.c.b16 %v308, %v307
    %v346 = vpack.c.b16 %v310, %v309
    %v347 = vpack.c.b16 %v312, %v311
    %v348 = vpack.c.b16 %v314, %v313
    %v349 = vpack.c.b16 %v316, %v315
    %v350 = vpack.c.b16 %v318, %v317
    %383 = vmatprep.subr.bf16.mxu0 0
    %384 = vmatpush1.bf16.msra.mxu0 %v326
    %385 = vmatprep.subr.bf16.mxu0 0
    %386 = vmatpush1.bf16.msra.mxu0 %v325
    %387 = vmatprep.subr.bf16.mxu0 0
    %388 = vmatpush1.bf16.msra.mxu0 %v324
    %389 = vmatprep.subr.bf16.mxu0 0
    %390 = vmatpush1.bf16.msra.mxu0 %v323
    %391 = vmatprep.subr.bf16.mxu0 0
    %392 = vmatpush1.bf16.msra.mxu0 %v322
    %393 = vmatprep.subr.bf16.mxu0 0
    %394 = vmatpush1.bf16.msra.mxu0 %v321
    %395 = vmatprep.subr.bf16.mxu0 0
    %396 = vmatpush1.bf16.msra.mxu0 %v320
    %397 = vmatprep.subr.bf16.mxu0 0
    %398 = vmatpush1.bf16.msra.mxu0 %v319
    %399 = vmatprep.subr.bf16.mxu0 0
    %400 = vmatpush2.bf16.msra.mxu0 %v334
    %401 = vmatprep.subr.bf16.mxu0 0
    %402 = vmatpush2.bf16.msra.mxu0 %v333
    %403 = vmatprep.subr.bf16.mxu0 0
    %404 = vmatpush2.bf16.msra.mxu0 %v332
    %405 = vmatprep.subr.bf16.mxu0 0
    %406 = vmatpush2.bf16.msra.mxu0 %v331
    %407 = vmatprep.subr.bf16.mxu0 0
    %408 = vmatpush2.bf16.msra.mxu0 %v330
    %409 = vmatprep.subr.bf16.mxu0 0
    %410 = vmatpush2.bf16.msra.mxu0 %v329
    %411 = vmatprep.subr.bf16.mxu0 0
    %412 = vmatpush2.bf16.msra.mxu0 %v328
    %413 = vmatprep.subr.bf16.mxu0 0
    %414 = vmatpush2.bf16.msra.mxu0 %v327
    %415 = vmatprep.mubr.bf16.mxu0 %v160
    %416 = vmatmul.mubr.bf16.gmra.mxu0 %v159
    %v417 = vpop.f32.mrf.mxu0
    %v418 = vadd.f32 0.0, %v417
    %v419 = vpop.f32.mrf.mxu0
    %v420 = vpop.f32.mrf.mxu0
    %v421 = vadd.f32 0.0, %v420
    %v422 = vpop.f32.mrf.mxu0
    %423 = vmatprep.mubr.bf16.mxu0 %v164
    %424 = vmatmul.mubr.bf16.gmra.mxu0 %v163
    %v425 = vpop.f32.mrf.mxu0
    %v426 = vadd.f32 0.0, %v425
    %v427 = vpop.f32.mrf.mxu0
    %v428 = vpop.f32.mrf.mxu0
    %v429 = vadd.f32 0.0, %v428
    %v430 = vpop.f32.mrf.mxu0
    %431 = vmatprep.mubr.bf16.mxu0 %v168
    %432 = vmatmul.mubr.bf16.gmra.mxu0 %v167
    %v433 = vpop.f32.mrf.mxu0
    %v434 = vadd.f32 0.0, %v433
    %v435 = vpop.f32.mrf.mxu0
    %v436 = vpop.f32.mrf.mxu0
    %v437 = vadd.f32 0.0, %v436
    %v438 = vpop.f32.mrf.mxu0
    %439 = vmatprep.mubr.bf16.mxu0 %v172
    %440 = vmatmul.mubr.bf16.gmra.mxu0 %v171
    %v441 = vpop.f32.mrf.mxu0
    %v442 = vadd.f32 0.0, %v441
    %v443 = vpop.f32.mrf.mxu0
    %v444 = vpop.f32.mrf.mxu0
    %v445 = vadd.f32 0.0, %v444
    %v446 = vpop.f32.mrf.mxu0
    %447 = vdwg.mxu0
    %448 = vmatprep.subr.bf16.mxu0 0
    %449 = vmatpush1.bf16.msra.mxu0 %v342
    %450 = vmatprep.subr.bf16.mxu0 0
    %451 = vmatpush1.bf16.msra.mxu0 %v341
    %452 = vmatprep.subr.bf16.mxu0 0
    %453 = vmatpush1.bf16.msra.mxu0 %v340
    %454 = vmatprep.subr.bf16.mxu0 0
    %455 = vmatpush1.bf16.msra.mxu0 %v339
    %456 = vmatprep.subr.bf16.mxu0 0
    %457 = vmatpush1.bf16.msra.mxu0 %v338
    %458 = vmatprep.subr.bf16.mxu0 0
    %459 = vmatpush1.bf16.msra.mxu0 %v337
    %460 = vmatprep.subr.bf16.mxu0 0
    %461 = vmatpush1.bf16.msra.mxu0 %v336
    %462 = vmatprep.subr.bf16.mxu0 0
    %463 = vmatpush1.bf16.msra.mxu0 %v335
    %464 = vmatprep.subr.bf16.mxu0 0
    %465 = vmatpush2.bf16.msra.mxu0 %v350
    %466 = vmatprep.subr.bf16.mxu0 0
    %467 = vmatpush2.bf16.msra.mxu0 %v349
    %468 = vmatprep.subr.bf16.mxu0 0
    %469 = vmatpush2.bf16.msra.mxu0 %v348
    %470 = vmatprep.subr.bf16.mxu0 0
    %471 = vmatpush2.bf16.msra.mxu0 %v347
    %472 = vmatprep.subr.bf16.mxu0 0
    %473 = vmatpush2.bf16.msra.mxu0 %v346
    %474 = vmatprep.subr.bf16.mxu0 0
    %475 = vmatpush2.bf16.msra.mxu0 %v345
    %476 = vmatprep.subr.bf16.mxu0 0
    %477 = vmatpush2.bf16.msra.mxu0 %v344
    %478 = vmatprep.subr.bf16.mxu0 0
    %479 = vmatpush2.bf16.msra.mxu0 %v343
    %480 = vmatprep.mubr.bf16.mxu0 %v162
    %481 = vmatmul.mubr.bf16.gmra.mxu0 %v161
    %v482 = vpop.f32.mrf.mxu0
    %v483 = vadd.f32 %v418, %v482
    %v484 = vpop.f32.mrf.mxu0
    %v485 = vpop.f32.mrf.mxu0
    %v486 = vadd.f32 %v421, %v485
    %v487 = vpop.f32.mrf.mxu0
    %488 = vmatprep.mubr.bf16.mxu0 %v166
    %489 = vmatmul.mubr.bf16.gmra.mxu0 %v165
    %v490 = vpop.f32.mrf.mxu0
    %v491 = vadd.f32 %v426, %v490
    %v492 = vpop.f32.mrf.mxu0
    %v493 = vpop.f32.mrf.mxu0
    %v494 = vadd.f32 %v429, %v493
    %v495 = vpop.f32.mrf.mxu0
    %496 = vmatprep.mubr.bf16.mxu0 %v170
    %497 = vmatmul.mubr.bf16.gmra.mxu0 %v169
    %v498 = vpop.f32.mrf.mxu0
    %v499 = vadd.f32 %v434, %v498
    %v500 = vpop.f32.mrf.mxu0
    %v501 = vpop.f32.mrf.mxu0
    %v502 = vadd.f32 %v437, %v501
    %v503 = vpop.f32.mrf.mxu0
    %504 = vmatprep.mubr.bf16.mxu0 %v174
    %505 = vmatmul.mubr.bf16.gmra.mxu0 %v173
    %v506 = vpop.f32.mrf.mxu0
    %v507 = vadd.f32 %v442, %v506
    %v508 = vpop.f32.mrf.mxu0
    %v509 = vpop.f32.mrf.mxu0
    %v510 = vadd.f32 %v445, %v509
    %v511 = vpop.f32.mrf.mxu0
    %512 = vdwg.mxu0
    %vm513 = vcmask 261120
    %v514 = vsel %vm513, %v483, 0.0
    %515 = vadd.xlane.f32.xlu0 %v514
    %v516 = vpop.xlane.xlu0 %515
    %v517 = vsel %vm513, %v486, 0.0
    %518 = vadd.xlane.f32.xlu0 %v517
    %v519 = vpop.xlane.xlu0 %518
    %v520 = vsel %vm513, %v491, 0.0
    %521 = vadd.xlane.f32.xlu0 %v520
    %v522 = vpop.xlane.xlu0 %521
    %v523 = vsel %vm513, %v494, 0.0
    %524 = vadd.xlane.f32.xlu0 %v523
    %v525 = vpop.xlane.xlu0 %524
    %v526 = vsel %vm513, %v499, 0.0
    %527 = vadd.xlane.f32.xlu0 %v526
    %v528 = vpop.xlane.xlu0 %527
    %v529 = vsel %vm513, %v502, 0.0
    %530 = vadd.xlane.f32.xlu0 %v529
    %v531 = vpop.xlane.xlu0 %530
    %v532 = vsel %vm513, %v507, 0.0
    %533 = vadd.xlane.f32.xlu0 %v532
    %v534 = vpop.xlane.xlu0 %533
    %v535 = vsel %vm513, %v510, 0.0
    %536 = vadd.xlane.f32.xlu0 %v535
    %v537 = vpop.xlane.xlu0 %536
    %v538 = vrcp.pop 32.0
    %v539 = vmul.f32 %v516, %v538
    %v540 = vmul.f32 %v519, %v538
    %v541 = vmul.f32 %v522, %v538
    %v542 = vmul.f32 %v525, %v538
    %v543 = vmul.f32 %v528, %v538
    %v544 = vmul.f32 %v531, %v538
    %v545 = vmul.f32 %v534, %v538
    %v546 = vmul.f32 %v537, %v538
    %v547 = vmul.f32 %v483, %v483
    %v548 = vmul.f32 %v486, %v486
    %v549 = vmul.f32 %v491, %v491
    %v550 = vmul.f32 %v494, %v494
    %v551 = vmul.f32 %v499, %v499
    %v552 = vmul.f32 %v502, %v502
    %v553 = vmul.f32 %v507, %v507
    %v554 = vmul.f32 %v510, %v510
    %v555 = vsel %vm513, %v547, 0.0
    %556 = vadd.xlane.f32.xlu0 %v555
    %v557 = vpop.xlane.xlu0 %556
    %v558 = vsel %vm513, %v548, 0.0
    %559 = vadd.xlane.f32.xlu0 %v558
    %v560 = vpop.xlane.xlu0 %559
    %v561 = vsel %vm513, %v549, 0.0
    %562 = vadd.xlane.f32.xlu0 %v561
    %v563 = vpop.xlane.xlu0 %562
    %v564 = vsel %vm513, %v550, 0.0
    %565 = vadd.xlane.f32.xlu0 %v564
    %v566 = vpop.xlane.xlu0 %565
    %v567 = vsel %vm513, %v551, 0.0
    %568 = vadd.xlane.f32.xlu0 %v567
    %v569 = vpop.xlane.xlu0 %568
    %v570 = vsel %vm513, %v552, 0.0
    %571 = vadd.xlane.f32.xlu0 %v570
    %v572 = vpop.xlane.xlu0 %571
    %v573 = vsel %vm513, %v553, 0.0
    %574 = vadd.xlane.f32.xlu0 %v573
    %v575 = vpop.xlane.xlu0 %574
    %v576 = vsel %vm513, %v554, 0.0
    %577 = vadd.xlane.f32.xlu0 %v576
    %v578 = vpop.xlane.xlu0 %577
    %v579 = vmul.f32 %v557, %v538
    %v580 = vmul.f32 %v560, %v538
    %v581 = vmul.f32 %v563, %v538
    %v582 = vmul.f32 %v566, %v538
    %v583 = vmul.f32 %v569, %v538
    %v584 = vmul.f32 %v572, %v538
    %v585 = vmul.f32 %v575, %v538
    %v586 = vmul.f32 %v578, %v538
    %v587 = vmul.f32 %v539, %v539
    %v588 = vmul.f32 %v540, %v540
    %v589 = vmul.f32 %v541, %v541
    %v590 = vmul.f32 %v542, %v542
    %v591 = vmul.f32 %v543, %v543
    %v592 = vmul.f32 %v544, %v544
    %v593 = vmul.f32 %v545, %v545
    %v594 = vmul.f32 %v546, %v546
    %v595 = vsub.f32 %v579, %v587
    %v596 = vsub.f32 %v580, %v588
    %v597 = vsub.f32 %v581, %v589
    %v598 = vsub.f32 %v582, %v590
    %v599 = vsub.f32 %v583, %v591
    %v600 = vsub.f32 %v584, %v592
    %v601 = vsub.f32 %v585, %v593
    %v602 = vsub.f32 %v586, %v594
    %v603 = vsub.f32 %v483, %v539
    %v604 = vsub.f32 %v486, %v540
    %v605 = vsub.f32 %v491, %v541
    %v606 = vsub.f32 %v494, %v542
    %v607 = vsub.f32 %v499, %v543
    %v608 = vsub.f32 %v502, %v544
    %v609 = vsub.f32 %v507, %v545
    %v610 = vsub.f32 %v510, %v546
    %v611 = vadd.f32 %v595, 1e-05
    %v612 = vadd.f32 %v596, 1e-05
    %v613 = vadd.f32 %v597, 1e-05
    %v614 = vadd.f32 %v598, 1e-05
    %v615 = vadd.f32 %v599, 1e-05
    %v616 = vadd.f32 %v600, 1e-05
    %v617 = vadd.f32 %v601, 1e-05
    %v618 = vadd.f32 %v602, 1e-05
    %v619 = vrsqrt.pop %v611
    %v620 = vrsqrt.pop %v612
    %v621 = vrsqrt.pop %v613
    %v622 = vrsqrt.pop %v614
    %v623 = vrsqrt.pop %v615
    %v624 = vrsqrt.pop %v616
    %v625 = vrsqrt.pop %v617
    %v626 = vrsqrt.pop %v618
    %v627 = vmul.f32 %v603, %v619
    %v628 = vmul.f32 %v604, %v620
    %v629 = vmul.f32 %v605, %v621
    %v630 = vmul.f32 %v606, %v622
    %v631 = vmul.f32 %v607, %v623
    %v632 = vmul.f32 %v608, %v624
    %v633 = vmul.f32 %v609, %v625
    %v634 = vmul.f32 %v610, %v626
    %v635 = vld [vmem:[%s2] sm:$0xff]
    %v636 = vld [vmem:[%s2 + $0x8] sm:$0xff]
    %v637 = vld [vmem:[%s2 + $0x10] sm:$0xff]
    %v638 = vld [vmem:[%s2 + $0x18] sm:$0xff]
    %v639 = vld [vmem:[%s2 + $0x20] sm:$0xff]
    %v640 = vld [vmem:[%s2 + $0x28] sm:$0xff]
    %v641 = vld [vmem:[%s2 + $0x30] sm:$0xff]
    %v642 = vld [vmem:[%s2 + $0x38] sm:$0xff]
    %644 = vset.pattern.permute.xlu0 0
    %645 = vperm.xlu0 %644, %v635
    %v646 = vpop.permute.xlu0 %645
    %649 = vset.pattern.permute.xlu0 0
    %650 = vperm.xlu0 %649, %v636
    %v651 = vpop.permute.xlu0 %650
    %654 = vset.pattern.permute.xlu0 0
    %655 = vperm.xlu0 %654, %v637
    %v656 = vpop.permute.xlu0 %655
    %659 = vset.pattern.permute.xlu0 0
    %660 = vperm.xlu0 %659, %v638
    %v661 = vpop.permute.xlu0 %660
    %664 = vset.pattern.permute.xlu0 0
    %665 = vperm.xlu0 %664, %v639
    %v666 = vpop.permute.xlu0 %665
    %669 = vset.pattern.permute.xlu0 0
    %670 = vperm.xlu0 %669, %v640
    %v671 = vpop.permute.xlu0 %670
    %674 = vset.pattern.permute.xlu0 0
    %675 = vperm.xlu0 %674, %v641
    %v676 = vpop.permute.xlu0 %675
    %679 = vset.pattern.permute.xlu0 0
    %680 = vperm.xlu0 %679, %v642
    %v681 = vpop.permute.xlu0 %680
    %v683 = vmul.f32 %v627, %v646
    %v684 = vmul.f32 %v628, %v651
    %v685 = vmul.f32 %v629, %v656
    %v686 = vmul.f32 %v630, %v661
    %v687 = vmul.f32 %v631, %v666
    %v688 = vmul.f32 %v632, %v671
    %v689 = vmul.f32 %v633, %v676
    %v690 = vmul.f32 %v634, %v681
    %v691 = vld [vmem:[%s3] sm:$0xff]
    %v692 = vld [vmem:[%s3 + $0x8] sm:$0xff]
    %v693 = vld [vmem:[%s3 + $0x10] sm:$0xff]
    %v694 = vld [vmem:[%s3 + $0x18] sm:$0xff]
    %v695 = vld [vmem:[%s3 + $0x20] sm:$0xff]
    %v696 = vld [vmem:[%s3 + $0x28] sm:$0xff]
    %v697 = vld [vmem:[%s3 + $0x30] sm:$0xff]
    %v698 = vld [vmem:[%s3 + $0x38] sm:$0xff]
    %700 = vset.pattern.permute.xlu0 0
    %701 = vperm.xlu0 %700, %v691
    %v702 = vpop.permute.xlu0 %701
    %705 = vset.pattern.permute.xlu0 0
    %706 = vperm.xlu0 %705, %v692
    %v707 = vpop.permute.xlu0 %706
    %710 = vset.pattern.permute.xlu0 0
    %711 = vperm.xlu0 %710, %v693
    %v712 = vpop.permute.xlu0 %711
    %715 = vset.pattern.permute.xlu0 0
    %716 = vperm.xlu0 %715, %v694
    %v717 = vpop.permute.xlu0 %716
    %720 = vset.pattern.permute.xlu0 0
    %721 = vperm.xlu0 %720, %v695
    %v722 = vpop.permute.xlu0 %721
    %725 = vset.pattern.permute.xlu0 0
    %726 = vperm.xlu0 %725, %v696
    %v727 = vpop.permute.xlu0 %726
    %730 = vset.pattern.permute.xlu0 0
    %731 = vperm.xlu0 %730, %v697
    %v732 = vpop.permute.xlu0 %731
    %735 = vset.pattern.permute.xlu0 0
    %736 = vperm.xlu0 %735, %v698
    %v737 = vpop.permute.xlu0 %736
    %v739 = vadd.f32 %v683, %v702
    %v740 = vadd.f32 %v684, %v707
    %v741 = vadd.f32 %v685, %v712
    %v742 = vadd.f32 %v686, %v717
    %v743 = vadd.f32 %v687, %v722
    %v744 = vadd.f32 %v688, %v727
    %v745 = vadd.f32 %v689, %v732
    %v746 = vadd.f32 %v690, %v737
    %vm747 = vcmp.gt.f32.partialorder %v739, 0.0
    %vm748 = vcmp.gt.f32.partialorder %v740, 0.0
    %vm749 = vcmp.gt.f32.partialorder %v741, 0.0
    %vm750 = vcmp.gt.f32.partialorder %v742, 0.0
    %vm751 = vcmp.gt.f32.partialorder %v743, 0.0
    %vm752 = vcmp.gt.f32.partialorder %v744, 0.0
    %vm753 = vcmp.gt.f32.partialorder %v745, 0.0
    %vm754 = vcmp.gt.f32.partialorder %v746, 0.0
    %v755 = vmul.f32 %v739, 0.2
    %v756 = vmul.f32 %v740, 0.2
    %v757 = vmul.f32 %v741, 0.2
    %v758 = vmul.f32 %v742, 0.2
    %v759 = vmul.f32 %v743, 0.2
    %v760 = vmul.f32 %v744, 0.2
    %v761 = vmul.f32 %v745, 0.2
    %v762 = vmul.f32 %v746, 0.2
    %v763 = vsel %vm747, %v739, %v755
    %v764 = vsel %vm748, %v740, %v756
    %v765 = vsel %vm749, %v741, %v757
    %v766 = vsel %vm750, %v742, %v758
    %v767 = vsel %vm751, %v743, %v759
    %v768 = vsel %vm752, %v744, %v760
    %v769 = vsel %vm753, %v745, %v761
    %v770 = vsel %vm754, %v746, %v762
    %v771 = vld [vmem:[%s4] sm:$0xff]
    %v772 = vld [vmem:[%s4 + $0x8] sm:$0xff]
    %v773 = vld [vmem:[%s4 + $0x10] sm:$0xff]
    %v774 = vld [vmem:[%s4 + $0x18] sm:$0xff]
    %v775 = vld [vmem:[%s4 + $0x20] sm:$0xff]
    %v776 = vld [vmem:[%s4 + $0x28] sm:$0xff]
    %v777 = vld [vmem:[%s4 + $0x30] sm:$0xff]
    %v778 = vld [vmem:[%s4 + $0x38] sm:$0xff]
    %v779 = vmul.f32 %v763, %v771
    %v780 = vmul.f32 %v764, %v772
    %v781 = vmul.f32 %v765, %v773
    %v782 = vmul.f32 %v766, %v774
    %v783 = vmul.f32 %v767, %v775
    %v784 = vmul.f32 %v768, %v776
    %v785 = vmul.f32 %v769, %v777
    %v786 = vmul.f32 %v770, %v778
    %v787 = vld [vmem:[%s5] sm:$0xff]
    %v788 = vld [vmem:[%s5 + $0x8] sm:$0xff]
    %v789 = vld [vmem:[%s5 + $0x10] sm:$0xff]
    %v790 = vld [vmem:[%s5 + $0x18] sm:$0xff]
    %v792 = vsel %vm513, %v779, 0
    %v795 = vsel %vm513, %v780, 0
    %v798 = vsel %vm513, %v781, 0
    %v801 = vsel %vm513, %v782, 0
    %v804 = vsel %vm513, %v783, 0
    %v807 = vsel %vm513, %v784, 0
    %v810 = vsel %vm513, %v785, 0
    %v813 = vsel %vm513, %v786, 0
    %815 = vmatprep.subr.mxu0 0.0
    %816 = vmatpush1.msra.mxu0 0.0
    %817 = vmatprep.subr.mxu0 0.0
    %818 = vmatpush1.msra.mxu0 0.0
    %819 = vmatprep.subr.mxu0 0.0
    %820 = vmatpush1.msra.mxu0 0.0
    %821 = vmatprep.subr.mxu0 0.0
    %822 = vmatpush1.msra.mxu0 0.0
    %823 = vmatprep.subr.mxu0 0.0
    %824 = vmatpush1.msra.mxu0 0.0
    %825 = vmatprep.subr.mxu0 0.0
    %826 = vmatpush1.msra.mxu0 0.0
    %827 = vmatprep.subr.mxu0 0.0
    %828 = vmatpush1.msra.mxu0 0.0
    %829 = vmatprep.subr.mxu0 0.0
    %830 = vmatpush1.msra.mxu0 0.0
    %831 = vmatprep.subr.mxu0 0.0
    %832 = vmatpush1.msra.mxu0 0.0
    %833 = vmatprep.subr.mxu0 0.0
    %834 = vmatpush1.msra.mxu0 0.0
    %835 = vmatprep.subr.mxu0 0.0
    %836 = vmatpush1.msra.mxu0 0.0
    %837 = vmatprep.subr.mxu0 0.0
    %838 = vmatpush1.msra.mxu0 0.0
    %839 = vmatprep.subr.mxu0 0.0
    %840 = vmatpush1.msra.mxu0 %v790
    %841 = vmatprep.subr.mxu0 0.0
    %842 = vmatpush1.msra.mxu0 %v789
    %843 = vmatprep.subr.mxu0 0.0
    %844 = vmatpush1.msra.mxu0 %v788
    %845 = vmatprep.subr.mxu0 0.0
    %846 = vmatpush1.msra.mxu0 %v787
    %847 = vmatprep.subr.mxu0 0.0
    %848 = vmatpush2.msra.mxu0 0.0
    %849 = vmatprep.subr.mxu0 0.0
    %850 = vmatpush2.msra.mxu0 0.0
    %851 = vmatprep.subr.mxu0 0.0
    %852 = vmatpush2.msra.mxu0 0.0
    %853 = vmatprep.subr.mxu0 0.0
    %854 = vmatpush2.msra.mxu0 0.0
    %855 = vmatprep.subr.mxu0 0.0
    %856 = vmatpush2.msra.mxu0 0.0
    %857 = vmatprep.subr.mxu0 0.0
    %858 = vmatpush2.msra.mxu0 0.0
    %859 = vmatprep.subr.mxu0 0.0
    %860 = vmatpush2.msra.mxu0 0.0
    %861 = vmatprep.subr.mxu0 0.0
    %862 = vmatpush2.msra.mxu0 0.0
    %863 = vmatprep.subr.mxu0 0.0
    %864 = vmatpush2.msra.mxu0 0.0
    %865 = vmatprep.subr.mxu0 0.0
    %866 = vmatpush2.msra.mxu0 0.0
    %867 = vmatprep.subr.mxu0 0.0
    %868 = vmatpush2.msra.mxu0 0.0
    %869 = vmatprep.subr.mxu0 0.0
    %870 = vmatpush2.msra.mxu0 0.0
    %871 = vmatprep.subr.mxu0 0.0
    %872 = vmatpush2.msra.mxu0 0.0
    %873 = vmatprep.subr.mxu0 0.0
    %874 = vmatpush2.msra.mxu0 0.0
    %875 = vmatprep.subr.mxu0 0.0
    %876 = vmatpush2.msra.mxu0 0.0
    %877 = vmatprep.subr.mxu0 0.0
    %878 = vmatpush2.msra.mxu0 0.0
    %879 = vmatprep.mubr.f32.mxu0 0.0
    %880 = vmatmul.mubr.f32.gmra.mxu0 %v792
    %v881 = vpop.f32.mrf.mxu0
    %v882 = vadd.f32 0.0, %v881
    %v883 = vpop.f32.mrf.mxu0
    %884 = vmatprep.mubr.f32.mxu0 0.0
    %885 = vmatmul.mubr.f32.gmra.mxu0 %v795
    %v886 = vpop.f32.mrf.mxu0
    %v887 = vadd.f32 0.0, %v886
    %v888 = vpop.f32.mrf.mxu0
    %889 = vmatprep.mubr.f32.mxu0 0.0
    %890 = vmatmul.mubr.f32.gmra.mxu0 %v798
    %v891 = vpop.f32.mrf.mxu0
    %v892 = vadd.f32 0.0, %v891
    %v893 = vpop.f32.mrf.mxu0
    %894 = vmatprep.mubr.f32.mxu0 0.0
    %895 = vmatmul.mubr.f32.gmra.mxu0 %v801
    %v896 = vpop.f32.mrf.mxu0
    %v897 = vadd.f32 0.0, %v896
    %v898 = vpop.f32.mrf.mxu0
    %899 = vmatprep.mubr.f32.mxu0 0.0
    %900 = vmatmul.mubr.f32.gmra.mxu0 %v804
    %v901 = vpop.f32.mrf.mxu0
    %v902 = vadd.f32 0.0, %v901
    %v903 = vpop.f32.mrf.mxu0
    %904 = vmatprep.mubr.f32.mxu0 0.0
    %905 = vmatmul.mubr.f32.gmra.mxu0 %v807
    %v906 = vpop.f32.mrf.mxu0
    %v907 = vadd.f32 0.0, %v906
    %v908 = vpop.f32.mrf.mxu0
    %909 = vmatprep.mubr.f32.mxu0 0.0
    %910 = vmatmul.mubr.f32.gmra.mxu0 %v810
    %v911 = vpop.f32.mrf.mxu0
    %v912 = vadd.f32 0.0, %v911
    %v913 = vpop.f32.mrf.mxu0
    %914 = vmatprep.mubr.f32.mxu0 0.0
    %915 = vmatmul.mubr.f32.gmra.mxu0 %v813
    %v916 = vpop.f32.mrf.mxu0
    %v917 = vadd.f32 0.0, %v916
    %v918 = vpop.f32.mrf.mxu0
    %919 = vdwg.mxu0
    %vm920 = vcmask 15360
    %v921 = vsel %vm920, %v882, 0.0
    %v922 = vsel %vm920, %v887, 0.0
    %v923 = vadd.f32 %v921, %v922
    %v924 = vsel %vm920, %v892, 0.0
    %v925 = vadd.f32 %v923, %v924
    %v926 = vsel %vm920, %v897, 0.0
    %v927 = vadd.f32 %v925, %v926
    %v928 = vsel %vm920, %v902, 0.0
    %v929 = vadd.f32 %v927, %v928
    %v930 = vsel %vm920, %v907, 0.0
    %v931 = vadd.f32 %v929, %v930
    %v932 = vsel %vm920, %v912, 0.0
    %v933 = vadd.f32 %v931, %v932
    %v934 = vsel %vm920, %v917, 0.0
    %v935 = vadd.f32 %v933, %v934
    %v936 = vrot.slane %v935, 4
    %v937 = vadd.f32 %v935, %v936
    %v938 = vrot.slane %v937, 2
    %v939 = vadd.f32 %v937, %v938
    %v940 = vrot.slane %v939, 1
    %v941 = vadd.f32 %v939, %v940
    %v942 = vld [vmem:[%s6] sm:$0xf]
    %v943 = vld [vmem:[%s7] sm:$0xf]
    %945 = vset.pattern.permute.xlu0 0
    %946 = vperm.xlu0 %945, %v942
    %v947 = vpop.permute.xlu0 %946
    %v949 = vmul.f32 %v947, %v943
    %vm950 = vcmask 11264
    %v951 = vsel %vm950, %v949, 0.0
    %v952 = vrot.slane %v951, 4
    %v953 = vadd.f32 %v951, %v952
    %v954 = vrot.slane %v953, 2
    %v955 = vadd.f32 %v953, %v954
    %v956 = vrot.slane %v955, 1
    %v957 = vadd.f32 %v955, %v956
    %v958 = vadd.f32 %v941, %v957
    %v959 = vxor.u32 %v958, 2147483648
    %v960 = vmul.f32 %v959, 1.442695
    %v961 = vpow.pop %v960
    %v962 = vadd.f32 %v961, 1.0
    %v963 = vrcp.pop %v962
    %v964 = vmul.f32 1.0, %v963
    %vm965 = vcmask 8192
    %966 = vst.msk [vmem:[#allocation2] sm:$0x1] %vm965, %v964
    // Predicated region
    $region34: #{dcgan_d_forward.7} parent=1 // pred_check
      _
    $region35: #{dcgan_d_forward.7} parent=1 // pred_check_branch
      %968 = sbr.rel (0) target = $region37
    $region36: #{dcgan_d_forward.7} parent=1 // pred_region
      %s970 = ssub.s32 16, 16
      %971 = vsyncadd [#allocation3], %s970
      %s973 = sshll.u32 [#allocation2], 4
      %s974 = int_to_ptr.vmem [resolvable:$true] %s973
      %976 = dma.vmem_to_hbm [thread:$0]  %s974, 16, %s8, [#allocation3]
    $region37: #{dcgan_d_forward.7} parent=1 // pred_fallthru
      _
    // Predicated region
    $region38: #{dcgan_d_forward.7} parent=1 // pred_check
      _
    $region39: #{dcgan_d_forward.7} parent=1 // pred_check_branch
      %978 = sbr.rel (0) target = $region41
    $region40: #{dcgan_d_forward.7} parent=1 // pred_region
      %979 = dma.done [#allocation3], 16
    $region41: #{dcgan_d_forward.7} parent=1 // pred_fallthru
      _
    %980 = vsyncpa [#allocation3], 1

</llo_original>
